<compile_context>
chip_gen: v7x
topology: tpu7x:2x2x1
jax: 0.10.0
libtpu: 0.0.40
codegen_flags: <defaults>
</compile_context>

<pallas_src>
import jax
import jax.numpy as jnp
from jax import lax
from jax.experimental import pallas as pl
from jax.experimental.pallas import tpu as pltpu


def _round_up(x, m):
    return ((x + m - 1) // m) * m


def _sigmoid(a):
    # sigmoid(a) == 0.5*(tanh(a/2)+1): tanh lowers to the EUP (own VLIW slot) and avoids
    # the exp-overflow path of 1/(1+exp(-a)).
    return 0.5 * (jnp.tanh(0.5 * a) + 1.0)


def decoder_kernel(mot_ref, h0_ref, enc_ref, encp_ref,
                   whid_ref, v_ref, wpc_ref, wih_ref, b3h_ref,
                   wout_ref, bout_ref, tmask_ref,
                   out_ref, attn_ref, hout_ref):
    S = mot_ref.shape[0]
    Bp, Tp, Hp = enc_ref.shape

    enc = enc_ref[...]            # (Bp,Tp,Hp)  encoder outputs, batch-major
    encp = encp_ref[...]          # (Bp,Tp,Hp)  hoisted enc @ Wa_e^T + b_attn
    whid = whid_ref[...]          # (Hp,4Hp)    fused [Wa_h^T | Whh_r^T | Whh_z^T | Whh_n^T]
    v = v_ref[...]                # (1,Hp)      attention v (zero in padded lanes)
    wpc = wpc_ref[...]            # (Hp,Hp)     context half of pre_linear (BN folded)
    wih = wih_ref[...]            # (Hp,3Hp)    GRU input weights, gate-blockwise padded
    b_ih = b3h_ref[0:1, :]        # (1,3Hp)
    b_hh = b3h_ref[1:2, :]        # (1,3Hp)
    wout = wout_ref[...]          # (Hp,Op)
    bout = bout_ref[...]          # (1,Op)
    tmask = tmask_ref[...]        # (1,Tp)      0 for real T positions, -1e30 for padding

    def step(s, hidden):
        # --- fused hidden-LHS matmul: [attention e1 | GRU gh_r | gh_z | gh_n] ----------
        hf = jnp.dot(hidden, whid, preferred_element_type=jnp.float32)     # (Bp,4Hp)
        e1 = hf[:, 0:Hp]                                                    # (Bp,Hp)
        gh = hf[:, Hp:] + b_hh                                              # (Bp,3Hp)

        # --- Attn.score + softmax over T (lane axis) -----------------------------------
        energy = jnp.tanh(e1[:, None, :] + encp)                            # (Bp,Tp,Hp)
        score = jnp.sum(energy * v[None, :, :], axis=-1) + tmask            # (Bp,Tp)
        score = score - jnp.max(score, axis=1, keepdims=True)
        p = jnp.exp(score)
        attn = p * pl.reciprocal(jnp.sum(p, axis=1, keepdims=True), approx=True)

        # --- context = attn . encoder_outputs ------------------------------------------
        context = jnp.sum(attn[:, :, None] * enc, axis=1)                   # (Bp,Hp)

        # --- pre_linear (motion half + folded BN bias precomputed host-side) + ReLU ----
        # TODO(synk): nn.Dropout(0.95) in the PyTorch forward is stochastic; identity here
        #             (inference semantics).
        pre = mot_ref[s] + jnp.dot(context, wpc, preferred_element_type=jnp.float32)
        x = jnp.maximum(pre, 0.0)

        # --- single-layer GRU step (PyTorch gate order r, z, n); slices 128-aligned ----
        gi = jnp.dot(x, wih, preferred_element_type=jnp.float32) + b_ih     # (Bp,3Hp)
        r = _sigmoid(gi[:, 0:Hp] + gh[:, 0:Hp])
        z = _sigmoid(gi[:, Hp:2 * Hp] + gh[:, Hp:2 * Hp])
        n = jnp.tanh(gi[:, 2 * Hp:] + r * gh[:, 2 * Hp:])
        h_new = (1.0 - z) * n + z * hidden                                  # (Bp,Hp)

        # --- out_layer + per-step writeback (lane-dense, Op is a 128 multiple) ---------
        out_ref[s] = jnp.dot(h_new, wout, preferred_element_type=jnp.float32) + bout
        attn_ref[s] = attn
        return h_new

    hout_ref[...] = lax.fori_loop(0, S, step, h0_ref[...], unroll=True)


def _pad2(x, r, c):
    return jnp.pad(x, ((0, r - x.shape[0]), (0, c - x.shape[1])))


def _pad3(x, a, b, c):
    return jnp.pad(x, ((0, a - x.shape[0]), (0, b - x.shape[1]), (0, c - x.shape[2])))


def pack_params(p, d_in):
    """Host-side preprocessing (done once): transpose/split/fuse weights, fold eval-mode
    BatchNorm, zero-pad H to a 128 multiple gate-blockwise, O to a 128 multiple."""
    H = p["w_hh"].shape[1]
    O = p["w_out"].shape[0]
    Hp = _round_up(H, 128)
    Op = _round_up(O, 128)

    scale = jax.lax.rsqrt(p["bn_var"] + 1e-5) * p["bn_gamma"]            # (1,H)
    w_pre_eff = p["w_pre"] * scale.T                                     # (H, Din+H)
    b_pre_eff = (p["b_pre"] - p["bn_mean"]) * scale + p["bn_beta"]       # (1,H)

    wa = p["w_attn"]                                                     # (H, 2H)
    wa_h_t = wa[:, :H].T                                                 # (H,H)
    wa_e_t = wa[:, H:].T                                                 # (H,H) host-side only

    whh_t = p["w_hh"].T                                                  # (H,3H)
    wih_t = p["w_ih"].T                                                  # (H,3H)

    def pad_gates(m):      # (H,3H) -> (Hp,3Hp), padded per gate so slices stay aligned
        return jnp.concatenate(
            [_pad2(m[:, g * H:(g + 1) * H], Hp, Hp) for g in range(3)], axis=1)

    def pad_gate_bias(b):  # (1,3H) -> (1,3Hp)
        return jnp.concatenate(
            [_pad2(b[:, g * H:(g + 1) * H], 1, Hp) for g in range(3)], axis=1)

    # Fuse the two matmuls that share `hidden` as LHS: [Wa_h^T | Whh^T] -> (Hp, 4Hp).
    w_hid = jnp.concatenate([_pad2(wa_h_t, Hp, Hp), pad_gates(whh_t)], axis=1)

    return dict(
        Hp=Hp, Op=Op,
        w_hid=w_hid,                                                     # (Hp,4Hp)
        v_attn=_pad2(p["v_attn"], 1, Hp),                                # (1,Hp)
        wp_c=_pad2(w_pre_eff[:, d_in:].T, Hp, Hp),                       # (Hp,Hp)
        wp_m=w_pre_eff[:, :d_in].T,                                      # (Din,H) host-side
        b_pre=b_pre_eff,                                                 # (1,H)   host-side
        wa_e_t=wa_e_t,                                                   # (H,H)   host-side
        b_attn=p["b_attn"],                                              # (1,H)   host-side
        w_ih=pad_gates(wih_t),                                           # (Hp,3Hp)
        b3h=jnp.concatenate([pad_gate_bias(p["b_ih"]),
                             pad_gate_bias(p["b_hh"])], axis=0),         # (2,3Hp)
        w_out=_pad2(p["w_out"].T, Hp, Op),                               # (Hp,Op)
        b_out=_pad2(p["b_out"], 1, Op),                                  # (1,Op)
    )


def bahdanau_decoder_rollout(motion_seq, last_hidden, encoder_outputs, params):
    """Run S consecutive decoder steps in ONE pallas_call (single grid step; all weights,
    encoder tensors and per-step inputs/outputs VMEM-resident).
    Returns (outputs [S,B,O], hidden [1,B,H], attn_weights [S,B,T])."""
    S, B, Din = motion_seq.shape
    T, _, H = encoder_outputs.shape
    O = params["w_out"].shape[0]

    pp = pack_params(params, Din)
    Hp, Op = pp["Hp"], pp["Op"]
    Bp = _round_up(B, 8)
    Tp = _round_up(T, 8)
    hi = jax.lax.Precision.HIGHEST

    # --- step-invariant / hidden-independent precompute: single MXU-efficient matmuls --
    enc_bth = jnp.transpose(encoder_outputs, (1, 0, 2))                       # (B,T,H)
    enc_proj = jnp.einsum("bth,hk->btk", enc_bth, pp["wa_e_t"],
                          precision=hi) + pp["b_attn"]                        # (B,T,H)
    mot_proj = jnp.einsum("sbd,dk->sbk", motion_seq, pp["wp_m"],
                          precision=hi) + pp["b_pre"]                         # (S,B,H)

    enc_p = _pad3(enc_bth, Bp, Tp, Hp)
    encproj_p = _pad3(enc_proj, Bp, Tp, Hp)
    mot_p = _pad3(mot_proj, S, Bp, Hp)
    h0_p = _pad2(last_hidden[-1], Bp, Hp)
    tmask = jnp.where(jnp.arange(Tp)[None, :] < T, 0.0, -1e30).astype(jnp.float32)

    c2 = lambda shape: pl.BlockSpec(shape, lambda i: (0, 0))
    c3 = lambda shape: pl.BlockSpec(shape, lambda i: (0, 0, 0))

    out_all, attn_all, h_fin = pl.pallas_call(
        decoder_kernel,
        out_shape=(jax.ShapeDtypeStruct((S, Bp, Op), jnp.float32),
                   jax.ShapeDtypeStruct((S, Bp, Tp), jnp.float32),
                   jax.ShapeDtypeStruct((Bp, Hp), jnp.float32)),
        grid_spec=pltpu.PrefetchScalarGridSpec(
            num_scalar_prefetch=0,
            grid=(1,),                               # whole rollout in one invocation
            in_specs=[
                c3((S, Bp, Hp)),      # mot_proj (all steps, bias/BN folded)
                c2((Bp, Hp)),         # initial hidden
                c3((Bp, Tp, Hp)),     # encoder outputs
                c3((Bp, Tp, Hp)),     # hoisted enc @ Wa_e^T + b_attn
                c2((Hp, 4 * Hp)),     # fused [Wa_h^T | Whh^T]
                c2((1, Hp)),          # attention v
                c2((Hp, Hp)),         # Wpre_context^T (BN folded)
                c2((Hp, 3 * Hp)),     # Wih^T
                c2((2, 3 * Hp)),      # packed [b_ih; b_hh]
                c2((Hp, Op)),         # Wout^T
                c2((1, Op)),          # b_out
                c2((1, Tp)),          # additive softmax mask for padded T positions
            ],
            out_specs=[
                c3((S, Bp, Op)),      # per-step outputs (lane-dense, Op = 128 multiple)
                c3((S, Bp, Tp)),      # per-step attention weights
                c2((Bp, Hp)),         # final hidden
            ],
        ),
        compiler_params=pltpu.CompilerParams(
            dimension_semantics=("arbitrary",)),
    )(mot_p, h0_p, enc_p, encproj_p,
      pp["w_hid"], pp["v_attn"], pp["wp_c"], pp["w_ih"], pp["b3h"],
      pp["w_out"], pp["b_out"], tmask)

    outputs = out_all[:, :B, :O]       # strip padding
    attn_w = attn_all[:, :B, :T]
    hidden = h_fin[:B, :H][None, :, :]
    return outputs, hidden, attn_w


def bahdanau_decoder_step(motion, last_hidden, encoder_outputs, params):
    """Single decoder step == the PyTorch module forward.
    Returns (output [B,O], hidden [1,B,H], attn_weights [B,1,T])."""
    outputs, hidden, attn = bahdanau_decoder_rollout(
        motion[None], last_hidden, encoder_outputs, params)
    return outputs[0], hidden, attn[0][:, None, :]


# ----------------------------------------------------------------------------------------
# Pure-JAX reference (mirrors the PyTorch forward, inference semantics), for verification.
# ----------------------------------------------------------------------------------------
def reference_step(motion, hidden, enc, params):
    T, B, H = enc.shape
    wa, ba, v = params["w_attn"], params["b_attn"][0], params["v_attn"][0]
    cat = jnp.concatenate([jnp.broadcast_to(hidden[None], (T, B, H)), enc], axis=-1)
    energy = jnp.tanh(jnp.einsum("tbk,hk->tbh", cat, wa) + ba)
    score = jnp.einsum("tbh,h->bt", energy, v)
    attn_w = jax.nn.softmax(score, axis=1)
    context = jnp.einsum("bt,tbh->bh", attn_w, enc)
    wp, bp = params["w_pre"], params["b_pre"][0]
    pre = jnp.concatenate([motion, context], axis=-1) @ wp.T + bp
    inv = jax.lax.rsqrt(params["bn_var"][0] + 1e-5)
    pre = (pre - params["bn_mean"][0]) * inv * params["bn_gamma"][0] + params["bn_beta"][0]
    x = jnp.maximum(pre, 0.0)
    gi = x @ params["w_ih"].T + params["b_ih"][0]
    gh = hidden @ params["w_hh"].T + params["b_hh"][0]
    r = jax.nn.sigmoid(gi[:, :H] + gh[:, :H])
    z = jax.nn.sigmoid(gi[:, H:2 * H] + gh[:, H:2 * H])
    n = jnp.tanh(gi[:, 2 * H:] + r * gh[:, 2 * H:])
    h_new = (1.0 - z) * n + z * hidden
    out = h_new @ params["w_out"].T + params["b_out"][0]
    return out, h_new, attn_w


def reference_rollout(motion_seq, last_hidden, enc, params):
    hidden = last_hidden[-1]
    outs, attns = [], []
    for s in range(motion_seq.shape[0]):
        o, hidden, a = reference_step(motion_seq[s], hidden, enc, params)
        outs.append(o)
        attns.append(a)
    return jnp.stack(outs), hidden[None], jnp.stack(attns)


def init_params(key, d_in, hidden, out_size):
    """Deterministic parameter init with shapes matching the PyTorch module."""
    H = hidden
    ks = jax.random.split(key, 11)

    def u(k, shape, fan_in):
        bound = 1.0 / jnp.sqrt(jnp.float32(fan_in))
        return jax.random.uniform(k, shape, jnp.float32, -bound, bound)

    return dict(
        w_attn=u(ks[0], (H, 2 * H), 2 * H),
        b_attn=u(ks[1], (1, H), 2 * H),
        v_attn=(jax.random.normal(ks[2], (1, H), jnp.float32) / jnp.sqrt(jnp.float32(H))),
        w_pre=u(ks[3], (H, d_in + H), d_in + H),
        b_pre=u(ks[4], (1, H), d_in + H),
        bn_gamma=jnp.ones((1, H), jnp.float32),
        bn_beta=jnp.zeros((1, H), jnp.float32),
        bn_mean=jnp.zeros((1, H), jnp.float32),
        bn_var=jnp.ones((1, H), jnp.float32),
        w_ih=u(ks[5], (3 * H, H), H),
        w_hh=u(ks[6], (3 * H, H), H),
        b_ih=u(ks[7], (1, 3 * H), H),
        b_hh=u(ks[8], (1, 3 * H), H),
        w_out=u(ks[9], (out_size, H), H),
        b_out=u(ks[10], (1, out_size), H),
    )


if __name__ == "__main__":
    key = jax.random.PRNGKey(0)
    B, T, D_IN, H, O, S = 2, 8, 16, 32, 16, 4

    k1, k2, k3, kp = jax.random.split(key, 4)
    motion_seq = jax.random.normal(k1, (S, B, D_IN), jnp.float32)      # S decode steps
    last_hidden = jax.random.normal(k2, (1, B, H), jnp.float32)        # [layers, batch, H]
    encoder_outputs = jax.random.normal(k3, (T, B, H), jnp.float32)    # [steps, batch, H]
    params = init_params(kp, D_IN, H, O)

    # Tolerances account for pl.reciprocal(approx=True) in the softmax denominator.
    # --- single step (== module forward) ---
    out, hidden, attn_w = bahdanau_decoder_step(motion_seq[0], last_hidden,
                                                encoder_outputs, params)
    jax.block_until_ready((out, hidden, attn_w))
    ro, rh, ra = reference_step(motion_seq[0], last_hidden[-1], encoder_outputs, params)
    assert out.shape == (B, O) and hidden.shape == (1, B, H) and attn_w.shape == (B, 1, T)
    assert jnp.allclose(out, ro, atol=5e-3), "single-step output mismatch"
    assert jnp.allclose(hidden[0], rh, atol=5e-3), "single-step hidden mismatch"
    assert jnp.allclose(attn_w[:, 0, :], ra, atol=2e-3), "single-step attention mismatch"

    # --- fused multi-step rollout (one pallas_call, everything VMEM-resident) ---
    outs, h_fin, attns = bahdanau_decoder_rollout(motion_seq, last_hidden,
                                                  encoder_outputs, params)
    jax.block_until_ready((outs, h_fin, attns))
    r_outs, r_h, r_attns = reference_rollout(motion_seq, last_hidden, encoder_outputs, params)
    assert outs.shape == (S, B, O) and h_fin.shape == (1, B, H) and attns.shape == (S, B, T)
    assert jnp.allclose(outs, r_outs, atol=1e-2), "rollout output mismatch"
    assert jnp.allclose(h_fin, r_h, atol=1e-2), "rollout hidden mismatch"
    assert jnp.allclose(attns, r_attns, atol=5e-3), "rollout attention mismatch"

    print("KERNEL_OK")
</pallas_src>

<mosaic_0001>
module attributes {stable_mosaic.version = 11 : i64} {
  func.func @decoder_kernel(%arg0: i32, %arg1: memref<1x8x128xf32, #tpu.memory_space<vmem>>, %arg2: memref<8x128xf32, #tpu.memory_space<vmem>>, %arg3: memref<8x8x128xf32, #tpu.memory_space<vmem>>, %arg4: memref<8x8x128xf32, #tpu.memory_space<vmem>>, %arg5: memref<128x512xf32, #tpu.memory_space<vmem>>, %arg6: memref<1x128xf32, #tpu.memory_space<vmem>>, %arg7: memref<128x128xf32, #tpu.memory_space<vmem>>, %arg8: memref<128x384xf32, #tpu.memory_space<vmem>>, %arg9: memref<2x384xf32, #tpu.memory_space<vmem>>, %arg10: memref<128x128xf32, #tpu.memory_space<vmem>>, %arg11: memref<1x128xf32, #tpu.memory_space<vmem>>, %arg12: memref<1x8xf32, #tpu.memory_space<vmem>>, %arg13: memref<1x8x128xf32, #tpu.memory_space<vmem>>, %arg14: memref<1x8x8xf32, #tpu.memory_space<vmem>>, %arg15: memref<8x128xf32, #tpu.memory_space<vmem>>) attributes {dimension_semantics = [#tpu.dimension_semantics<arbitrary>], iteration_bounds = array<i64: 1>, scalar_prefetch = 0 : i64, scratch_operands = 0 : i64, tpu.core_type = #tpu.core_type<tc>, window_params = [{pipeline_mode = #tpu.pipeline_mode<synchronous>, transform_indices = @transform_0, window_bounds = array<i64: 1, 8, 128>}, {pipeline_mode = #tpu.pipeline_mode<synchronous>, transform_indices = @transform_1, window_bounds = array<i64: 8, 128>}, {pipeline_mode = #tpu.pipeline_mode<synchronous>, transform_indices = @transform_2, window_bounds = array<i64: 8, 8, 128>}, {pipeline_mode = #tpu.pipeline_mode<synchronous>, transform_indices = @transform_3, window_bounds = array<i64: 8, 8, 128>}, {pipeline_mode = #tpu.pipeline_mode<synchronous>, transform_indices = @transform_4, window_bounds = array<i64: 128, 512>}, {pipeline_mode = #tpu.pipeline_mode<synchronous>, transform_indices = @transform_5, window_bounds = array<i64: 1, 128>}, {pipeline_mode = #tpu.pipeline_mode<synchronous>, transform_indices = @transform_6, window_bounds = array<i64: 128, 128>}, {pipeline_mode = #tpu.pipeline_mode<synchronous>, transform_indices = @transform_7, window_bounds = array<i64: 128, 384>}, {pipeline_mode = #tpu.pipeline_mode<synchronous>, transform_indices = @transform_8, window_bounds = array<i64: 2, 384>}, {pipeline_mode = #tpu.pipeline_mode<synchronous>, transform_indices = @transform_9, window_bounds = array<i64: 128, 128>}, {pipeline_mode = #tpu.pipeline_mode<synchronous>, transform_indices = @transform_10, window_bounds = array<i64: 1, 128>}, {pipeline_mode = #tpu.pipeline_mode<synchronous>, transform_indices = @transform_11, window_bounds = array<i64: 1, 8>}, {pipeline_mode = #tpu.pipeline_mode<synchronous>, transform_indices = @transform_12, window_bounds = array<i64: 1, 8, 128>}, {pipeline_mode = #tpu.pipeline_mode<synchronous>, transform_indices = @transform_13, window_bounds = array<i64: 1, 8, 8>}, {pipeline_mode = #tpu.pipeline_mode<synchronous>, transform_indices = @transform_14, window_bounds = array<i64: 8, 128>}]} {
    %c0 = arith.constant 0 : index
    %c0_0 = arith.constant 0 : index
    %c0_1 = arith.constant 0 : index
    %0 = vector.load %arg3[%c0, %c0_0, %c0_1] : memref<8x8x128xf32, #tpu.memory_space<vmem>>, vector<8x8x128xf32>
    %c0_2 = arith.constant 0 : index
    %c0_3 = arith.constant 0 : index
    %c0_4 = arith.constant 0 : index
    %1 = vector.load %arg4[%c0_2, %c0_3, %c0_4] : memref<8x8x128xf32, #tpu.memory_space<vmem>>, vector<8x8x128xf32>
    %c0_5 = arith.constant 0 : index
    %c0_6 = arith.constant 0 : index
    %2 = vector.load %arg5[%c0_5, %c0_6] : memref<128x512xf32, #tpu.memory_space<vmem>>, vector<128x512xf32>
    %c0_7 = arith.constant 0 : index
    %c0_8 = arith.constant 0 : index
    %3 = vector.load %arg6[%c0_7, %c0_8] : memref<1x128xf32, #tpu.memory_space<vmem>>, vector<1x128xf32>
    %c0_9 = arith.constant 0 : index
    %c0_10 = arith.constant 0 : index
    %4 = vector.load %arg7[%c0_9, %c0_10] : memref<128x128xf32, #tpu.memory_space<vmem>>, vector<128x128xf32>
    %c0_11 = arith.constant 0 : index
    %c0_12 = arith.constant 0 : index
    %5 = vector.load %arg8[%c0_11, %c0_12] : memref<128x384xf32, #tpu.memory_space<vmem>>, vector<128x384xf32>
    %c0_13 = arith.constant 0 : index
    %c0_14 = arith.constant 0 : index
    %6 = vector.load %arg9[%c0_13, %c0_14] : memref<2x384xf32, #tpu.memory_space<vmem>>, vector<1x384xf32>
    %c1 = arith.constant 1 : index
    %c0_15 = arith.constant 0 : index
    %7 = vector.load %arg9[%c1, %c0_15] : memref<2x384xf32, #tpu.memory_space<vmem>>, vector<1x384xf32>
    %c0_16 = arith.constant 0 : index
    %c0_17 = arith.constant 0 : index
    %8 = vector.load %arg10[%c0_16, %c0_17] : memref<128x128xf32, #tpu.memory_space<vmem>>, vector<128x128xf32>
    %c0_18 = arith.constant 0 : index
    %c0_19 = arith.constant 0 : index
    %9 = vector.load %arg11[%c0_18, %c0_19] : memref<1x128xf32, #tpu.memory_space<vmem>>, vector<1x128xf32>
    %c0_20 = arith.constant 0 : index
    %c0_21 = arith.constant 0 : index
    %10 = vector.load %arg12[%c0_20, %c0_21] : memref<1x8xf32, #tpu.memory_space<vmem>>, vector<1x8xf32>
    %c0_22 = arith.constant 0 : index
    %c0_23 = arith.constant 0 : index
    %11 = vector.load %arg2[%c0_22, %c0_23] : memref<8x128xf32, #tpu.memory_space<vmem>>, vector<8x128xf32>
    %c0_i32 = arith.constant 0 : i32
    %cst = arith.constant dense<0.000000e+00> : vector<8x512xf32>
    %12 = tpu.matmul %11, %2, %cst {dimension_numbers = #tpu.dot_dimension_numbers<[1], [0], [0], [1], [0, 0, 1, 1], [], []>} : vector<8x128xf32>, vector<128x512xf32>, vector<8x512xf32> -> vector<8x512xf32>
    %13 = vector.extract_strided_slice %12 {offsets = [0, 0], sizes = [8, 128], strides = [1, 1]} : vector<8x512xf32> to vector<8x128xf32>
    %14 = vector.extract_strided_slice %12 {offsets = [0, 128], sizes = [8, 384], strides = [1, 1]} : vector<8x512xf32> to vector<8x384xf32>
    %15 = vector.broadcast %7 : vector<1x384xf32> to vector<8x384xf32>
    %16 = arith.addf %14, %15 : vector<8x384xf32>
    %17 = vector.shape_cast %13 : vector<8x128xf32> to vector<8x1x128xf32>
    %18 = vector.broadcast %17 : vector<8x1x128xf32> to vector<8x8x128xf32>
    %19 = arith.addf %18, %1 : vector<8x8x128xf32>
    %20 = math.tanh %19 : vector<8x8x128xf32>
    %21 = vector.shape_cast %3 : vector<1x128xf32> to vector<1x1x128xf32>
    %22 = vector.broadcast %21 : vector<1x1x128xf32> to vector<8x8x128xf32>
    %23 = arith.mulf %20, %22 : vector<8x8x128xf32>
    %cst_24 = arith.constant dense<0.000000e+00> : vector<8x8xf32>
    %24 = vector.multi_reduction <add>, %23, %cst_24 [2] : vector<8x8x128xf32> to vector<8x8xf32>
    %25 = vector.broadcast %10 : vector<1x8xf32> to vector<8x8xf32>
    %26 = arith.addf %24, %25 : vector<8x8xf32>
    %cst_25 = arith.constant dense<0xFF800000> : vector<8xf32>
    %27 = vector.multi_reduction <maximumf>, %26, %cst_25 [1] : vector<8x8xf32> to vector<8xf32>
    %28 = vector.shape_cast %27 : vector<8xf32> to vector<8x1xf32>
    %29 = vector.broadcast %28 : vector<8x1xf32> to vector<8x8xf32>
    %30 = arith.subf %26, %29 : vector<8x8xf32>
    %31 = math.exp %30 : vector<8x8xf32>
    %cst_26 = arith.constant dense<0.000000e+00> : vector<8xf32>
    %32 = vector.multi_reduction <add>, %31, %cst_26 [1] : vector<8x8xf32> to vector<8xf32>
    %33 = vector.shape_cast %32 : vector<8xf32> to vector<8x1xf32>
    %34 = tpu.reciprocal %33 {approx = true} : vector<8x1xf32> -> vector<8x1xf32>
    %35 = vector.broadcast %34 : vector<8x1xf32> to vector<8x8xf32>
    %36 = arith.mulf %31, %35 : vector<8x8xf32>
    %37 = vector.shape_cast %36 : vector<8x8xf32> to vector<8x8x1xf32>
    %38 = vector.broadcast %37 : vector<8x8x1xf32> to vector<8x8x128xf32>
    %39 = arith.mulf %38, %0 : vector<8x8x128xf32>
    %cst_27 = arith.constant dense<0.000000e+00> : vector<8x128xf32>
    %40 = vector.multi_reduction <add>, %39, %cst_27 [1] : vector<8x8x128xf32> to vector<8x128xf32>
    %41 = arith.index_cast %c0_i32 : i32 to index
    %c0_28 = arith.constant 0 : index
    %c0_29 = arith.constant 0 : index
    %42 = vector.load %arg1[%41, %c0_28, %c0_29] : memref<1x8x128xf32, #tpu.memory_space<vmem>>, vector<1x8x128xf32>
    %43 = vector.shape_cast %42 : vector<1x8x128xf32> to vector<8x128xf32>
    %cst_30 = arith.constant dense<0.000000e+00> : vector<8x128xf32>
    %44 = tpu.matmul %40, %4, %cst_30 {dimension_numbers = #tpu.dot_dimension_numbers<[1], [0], [0], [1], [0, 0, 1, 1], [], []>} : vector<8x128xf32>, vector<128x128xf32>, vector<8x128xf32> -> vector<8x128xf32>
    %45 = arith.addf %43, %44 : vector<8x128xf32>
    %cst_31 = arith.constant 0.000000e+00 : f32
    %46 = vector.broadcast %cst_31 : f32 to vector<8x128xf32>
    %47 = arith.maximumf %45, %46 : vector<8x128xf32>
    %cst_32 = arith.constant dense<0.000000e+00> : vector<8x384xf32>
    %48 = tpu.matmul %47, %5, %cst_32 {dimension_numbers = #tpu.dot_dimension_numbers<[1], [0], [0], [1], [0, 0, 1, 1], [], []>} : vector<8x128xf32>, vector<128x384xf32>, vector<8x384xf32> -> vector<8x384xf32>
    %49 = vector.broadcast %6 : vector<1x384xf32> to vector<8x384xf32>
    %50 = arith.addf %48, %49 : vector<8x384xf32>
    %51 = vector.extract_strided_slice %50 {offsets = [0, 0], sizes = [8, 128], strides = [1, 1]} : vector<8x384xf32> to vector<8x128xf32>
    %52 = vector.extract_strided_slice %16 {offsets = [0, 0], sizes = [8, 128], strides = [1, 1]} : vector<8x384xf32> to vector<8x128xf32>
    %53 = arith.addf %51, %52 : vector<8x128xf32>
    %cst_33 = arith.constant 5.000000e-01 : f32
    %54 = vector.broadcast %cst_33 : f32 to vector<8x128xf32>
    %55 = arith.mulf %54, %53 : vector<8x128xf32>
    %56 = math.tanh %55 : vector<8x128xf32>
    %cst_34 = arith.constant 1.000000e+00 : f32
    %57 = vector.broadcast %cst_34 : f32 to vector<8x128xf32>
    %58 = arith.addf %56, %57 : vector<8x128xf32>
    %cst_35 = arith.constant 5.000000e-01 : f32
    %59 = vector.broadcast %cst_35 : f32 to vector<8x128xf32>
    %60 = arith.mulf %59, %58 : vector<8x128xf32>
    %61 = vector.extract_strided_slice %50 {offsets = [0, 128], sizes = [8, 128], strides = [1, 1]} : vector<8x384xf32> to vector<8x128xf32>
    %62 = vector.extract_strided_slice %16 {offsets = [0, 128], sizes = [8, 128], strides = [1, 1]} : vector<8x384xf32> to vector<8x128xf32>
    %63 = arith.addf %61, %62 : vector<8x128xf32>
    %cst_36 = arith.constant 5.000000e-01 : f32
    %64 = vector.broadcast %cst_36 : f32 to vector<8x128xf32>
    %65 = arith.mulf %64, %63 : vector<8x128xf32>
    %66 = math.tanh %65 : vector<8x128xf32>
    %cst_37 = arith.constant 1.000000e+00 : f32
    %67 = vector.broadcast %cst_37 : f32 to vector<8x128xf32>
    %68 = arith.addf %66, %67 : vector<8x128xf32>
    %cst_38 = arith.constant 5.000000e-01 : f32
    %69 = vector.broadcast %cst_38 : f32 to vector<8x128xf32>
    %70 = arith.mulf %69, %68 : vector<8x128xf32>
    %71 = vector.extract_strided_slice %50 {offsets = [0, 256], sizes = [8, 128], strides = [1, 1]} : vector<8x384xf32> to vector<8x128xf32>
    %72 = vector.extract_strided_slice %16 {offsets = [0, 256], sizes = [8, 128], strides = [1, 1]} : vector<8x384xf32> to vector<8x128xf32>
    %73 = arith.mulf %60, %72 : vector<8x128xf32>
    %74 = arith.addf %71, %73 : vector<8x128xf32>
    %75 = math.tanh %74 : vector<8x128xf32>
    %cst_39 = arith.constant 1.000000e+00 : f32
    %76 = vector.broadcast %cst_39 : f32 to vector<8x128xf32>
    %77 = arith.subf %76, %70 : vector<8x128xf32>
    %78 = arith.mulf %77, %75 : vector<8x128xf32>
    %79 = arith.mulf %70, %11 : vector<8x128xf32>
    %80 = arith.addf %78, %79 : vector<8x128xf32>
    %cst_40 = arith.constant dense<0.000000e+00> : vector<8x128xf32>
    %81 = tpu.matmul %80, %8, %cst_40 {dimension_numbers = #tpu.dot_dimension_numbers<[1], [0], [0], [1], [0, 0, 1, 1], [], []>} : vector<8x128xf32>, vector<128x128xf32>, vector<8x128xf32> -> vector<8x128xf32>
    %82 = vector.broadcast %9 : vector<1x128xf32> to vector<8x128xf32>
    %83 = arith.addf %81, %82 : vector<8x128xf32>
    %84 = arith.index_cast %c0_i32 : i32 to index
    %c0_41 = arith.constant 0 : index
    %c0_42 = arith.constant 0 : index
    %85 = vector.load %arg13[%84, %c0_41, %c0_42] : memref<1x8x128xf32, #tpu.memory_space<vmem>>, vector<1x8x128xf32>
    %86 = vector.shape_cast %85 : vector<1x8x128xf32> to vector<8x128xf32>
    %87 = vector.shape_cast %83 : vector<8x128xf32> to vector<1x8x128xf32>
    tpu.vector_store %arg13[%84, %c0_41, %c0_42], %87 {strides = array<i32>} : memref<1x8x128xf32, #tpu.memory_space<vmem>>, vector<1x8x128xf32>,
    %88 = arith.index_cast %c0_i32 : i32 to index
    %c0_43 = arith.constant 0 : index
    %c0_44 = arith.constant 0 : index
    %89 = vector.load %arg14[%88, %c0_43, %c0_44] : memref<1x8x8xf32, #tpu.memory_space<vmem>>, vector<1x8x8xf32>
    %90 = vector.shape_cast %89 : vector<1x8x8xf32> to vector<8x8xf32>
    %91 = vector.shape_cast %36 : vector<8x8xf32> to vector<1x8x8xf32>
    tpu.vector_store %arg14[%88, %c0_43, %c0_44], %91 {strides = array<i32>} : memref<1x8x8xf32, #tpu.memory_space<vmem>>, vector<1x8x8xf32>,
    %c1_i32 = arith.constant 1 : i32
    %c0_45 = arith.constant 0 : index
    %c0_46 = arith.constant 0 : index
    %92 = vector.load %arg15[%c0_45, %c0_46] : memref<8x128xf32, #tpu.memory_space<vmem>>, vector<8x128xf32>
    tpu.vector_store %arg15[%c0_45, %c0_46], %80 {strides = array<i32>} : memref<8x128xf32, #tpu.memory_space<vmem>>, vector<8x128xf32>,
    return
  }
  func.func @transform_0(%arg0: i32) -> (i32, i32, i32) {
    %c0_i32 = arith.constant 0 : i32
    %c0_i32_0 = arith.constant 0 : i32
    %c0_i32_1 = arith.constant 0 : i32
    %c0_i32_2 = arith.constant 0 : i32
    return %c0_i32, %c0_i32_0, %c0_i32_1 : i32, i32, i32
  }
  func.func @transform_1(%arg0: i32) -> (i32, i32) {
    %c0_i32 = arith.constant 0 : i32
    %c0_i32_0 = arith.constant 0 : i32
    %c0_i32_1 = arith.constant 0 : i32
    return %c0_i32, %c0_i32_0 : i32, i32
  }
  func.func @transform_2(%arg0: i32) -> (i32, i32, i32) {
    %c0_i32 = arith.constant 0 : i32
    %c0_i32_0 = arith.constant 0 : i32
    %c0_i32_1 = arith.constant 0 : i32
    %c0_i32_2 = arith.constant 0 : i32
    return %c0_i32, %c0_i32_0, %c0_i32_1 : i32, i32, i32
  }
  func.func @transform_3(%arg0: i32) -> (i32, i32, i32) {
    %c0_i32 = arith.constant 0 : i32
    %c0_i32_0 = arith.constant 0 : i32
    %c0_i32_1 = arith.constant 0 : i32
    %c0_i32_2 = arith.constant 0 : i32
    return %c0_i32, %c0_i32_0, %c0_i32_1 : i32, i32, i32
  }
  func.func @transform_4(%arg0: i32) -> (i32, i32) {
    %c0_i32 = arith.constant 0 : i32
    %c0_i32_0 = arith.constant 0 : i32
    %c0_i32_1 = arith.constant 0 : i32
    return %c0_i32, %c0_i32_0 : i32, i32
  }
  func.func @transform_5(%arg0: i32) -> (i32, i32) {
    %c0_i32 = arith.constant 0 : i32
    %c0_i32_0 = arith.constant 0 : i32
    %c0_i32_1 = arith.constant 0 : i32
    return %c0_i32, %c0_i32_0 : i32, i32
  }
  func.func @transform_6(%arg0: i32) -> (i32, i32) {
    %c0_i32 = arith.constant 0 : i32
    %c0_i32_0 = arith.constant 0 : i32
    %c0_i32_1 = arith.constant 0 : i32
    return %c0_i32, %c0_i32_0 : i32, i32
  }
  func.func @transform_7(%arg0: i32) -> (i32, i32) {
    %c0_i32 = arith.constant 0 : i32
    %c0_i32_0 = arith.constant 0 : i32
    %c0_i32_1 = arith.constant 0 : i32
    return %c0_i32, %c0_i32_0 : i32, i32
  }
  func.func @transform_8(%arg0: i32) -> (i32, i32) {
    %c0_i32 = arith.constant 0 : i32
    %c0_i32_0 = arith.constant 0 : i32
    %c0_i32_1 = arith.constant 0 : i32
    return %c0_i32, %c0_i32_0 : i32, i32
  }
  func.func @transform_9(%arg0: i32) -> (i32, i32) {
    %c0_i32 = arith.constant 0 : i32
    %c0_i32_0 = arith.constant 0 : i32
    %c0_i32_1 = arith.constant 0 : i32
    return %c0_i32, %c0_i32_0 : i32, i32
  }
  func.func @transform_10(%arg0: i32) -> (i32, i32) {
    %c0_i32 = arith.constant 0 : i32
    %c0_i32_0 = arith.constant 0 : i32
    %c0_i32_1 = arith.constant 0 : i32
    return %c0_i32, %c0_i32_0 : i32, i32
  }
  func.func @transform_11(%arg0: i32) -> (i32, i32) {
    %c0_i32 = arith.constant 0 : i32
    %c0_i32_0 = arith.constant 0 : i32
    %c0_i32_1 = arith.constant 0 : i32
    return %c0_i32, %c0_i32_0 : i32, i32
  }
  func.func @transform_12(%arg0: i32) -> (i32, i32, i32) {
    %c0_i32 = arith.constant 0 : i32
    %c0_i32_0 = arith.constant 0 : i32
    %c0_i32_1 = arith.constant 0 : i32
    %c0_i32_2 = arith.constant 0 : i32
    return %c0_i32, %c0_i32_0, %c0_i32_1 : i32, i32, i32
  }
  func.func @transform_13(%arg0: i32) -> (i32, i32, i32) {
    %c0_i32 = arith.constant 0 : i32
    %c0_i32_0 = arith.constant 0 : i32
    %c0_i32_1 = arith.constant 0 : i32
    %c0_i32_2 = arith.constant 0 : i32
    return %c0_i32, %c0_i32_0, %c0_i32_1 : i32, i32, i32
  }
  func.func @transform_14(%arg0: i32) -> (i32, i32) {
    %c0_i32 = arith.constant 0 : i32
    %c0_i32_0 = arith.constant 0 : i32
    %c0_i32_1 = arith.constant 0 : i32
    return %c0_i32, %c0_i32_0 : i32, i32
  }
}

</mosaic_0001>

<llo_original>
// kernel: tpu_custom_call.1
$region0: #{tpu_custom_call.1}
  #allocation0 [shape = 'u32[]', space=smem, size = 0x4, offset = 0x4, fixed_abs, tag = 'smem constant byte address 0x4 - core index']
  #allocation1 [shape = 'u32[144,128]{1,0:T(1,128)}', space=vmem, size = 0x12000, scoped, tag = 'internal scratch']
  %s0 = inlined_call_operand.hbm [shape: f32[1,8,128], index: 0, kind: input, shape index: {}]
  %s1 = inlined_call_operand.hbm [shape: f32[8,128], index: 1, kind: input, shape index: {}]
  %s2 = inlined_call_operand.hbm [shape: f32[8,8,128], index: 2, kind: input, shape index: {}]
  %s3 = inlined_call_operand.hbm [shape: f32[8,8,128], index: 3, kind: input, shape index: {}]
  %s4 = inlined_call_operand.hbm [shape: f32[128,512], index: 4, kind: input, shape index: {}]
  %s5 = inlined_call_operand.vmem [shape: f32[1,128], index: 5, kind: input, shape index: {}]
  %s6 = inlined_call_operand.hbm [shape: f32[128,128], index: 6, kind: input, shape index: {}]
  %s7 = inlined_call_operand.hbm [shape: f32[128,384], index: 7, kind: input, shape index: {}]
  %s8 = inlined_call_operand.vmem [shape: f32[2,384], index: 8, kind: input, shape index: {}]
  %s9 = inlined_call_operand.hbm [shape: f32[128,128], index: 9, kind: input, shape index: {}]
  %s10 = inlined_call_operand.vmem [shape: f32[1,128], index: 10, kind: input, shape index: {}]
  %s11 = inlined_call_operand.vmem [shape: f32[1,8], index: 11, kind: input, shape index: {}]
  %s12 = inlined_call_operand.hbm [shape: f32[1,8,128], index: 12, kind: output, shape index: {0}]
  %s13 = inlined_call_operand.hbm [shape: f32[1,8,8], index: 13, kind: output, shape index: {1}]
  %s14 = inlined_call_operand.hbm [shape: f32[8,128], index: 14, kind: output, shape index: {2}]
  %15 = xla_tuple %s12, %s13, %s14
  %s16 = sld [smem:[#allocation0]]
  $region106: #{tpu_custom_call.1} parent=0
    _
  %s18 = ssub.s32 1, %s16
  %s19 = scalar_select 0, %s18, %s16
  $region1: #{tpu_custom_call.1} parent=0
    #allocation2 [shape = 'u8[4096]{0}', space=vmem, size = 0x1000, scoped, tag = 'input window, operand 0, single buffered']
    #allocation3 [shape = 's32[1]{0}', space=sflag, size = 0x4, scoped, tag = 'scoped memory for tpu_custom_call.1']
    #allocation4 [shape = 's32[1]{0}', space=sflag, size = 0x4, scoped, tag = 'scoped memory for tpu_custom_call.1']
    #allocation5 [shape = 'u8[4096]{0}', space=vmem, size = 0x1000, scoped, tag = 'input window, operand 1, single buffered']
    #allocation6 [shape = 's32[1]{0}', space=sflag, size = 0x4, scoped, tag = 'scoped memory for tpu_custom_call.1']
    #allocation7 [shape = 'u8[32768]{0}', space=vmem, size = 0x8000, scoped, tag = 'input window, operand 2, single buffered']
    #allocation8 [shape = 'u8[32768]{0}', space=vmem, size = 0x8000, scoped, tag = 'input window, operand 3, single buffered']
    #allocation9 [shape = 's32[1]{0}', space=sflag, size = 0x4, scoped, tag = 'scoped memory for tpu_custom_call.1']
    #allocation10 [shape = 'u8[262144]{0}', space=vmem, size = 0x40000, scoped, tag = 'input window, operand 4, single buffered']
    #allocation11 [shape = 'u8[65536]{0}', space=vmem, size = 0x10000, scoped, tag = 'input window, operand 6, single buffered']
    #allocation12 [shape = 's32[1]{0}', space=sflag, size = 0x4, scoped, tag = 'scoped memory for tpu_custom_call.1']
    #allocation13 [shape = 'u8[196608]{0}', space=vmem, size = 0x30000, scoped, tag = 'input window, operand 7, single buffered']
    #allocation14 [shape = 'u8[65536]{0}', space=vmem, size = 0x10000, scoped, tag = 'input window, operand 9, single buffered']
    #allocation15 [shape = 's32[1]{0}', space=sflag, size = 0x4, scoped, tag = 'scoped memory for tpu_custom_call.1']
    #allocation16 [shape = 'u8[4096]{0}', space=vmem, size = 0x1000, scoped, tag = 'output window, operand 0, single buffered']
    #allocation17 [shape = 'u8[4096]{0}', space=vmem, size = 0x1000, scoped, tag = 'output window, operand 1, single buffered']
    #allocation18 [shape = 's32[1]{0}', space=sflag, size = 0x4, scoped, tag = 'scoped memory for tpu_custom_call.1']
    #allocation19 [shape = 'u8[4096]{0}', space=vmem, size = 0x1000, scoped, tag = 'output window, operand 2, single buffered']
    %20 = vsyncpa [#allocation3], 0
    %21 = vsyncpa [#allocation6], 0
    %22 = vsyncpa [#allocation9], 0
    %23 = vsyncpa [#allocation12], 0
    %24 = vsyncpa [#allocation15], 0
    %25 = vsyncpa [#allocation4], 0
    %26 = vsyncpa [#allocation18], 0
    // Predicated region
    $region2: #{tpu_custom_call.1} parent=1 // pred_check
      _
    $region3: #{tpu_custom_call.1} parent=1 // pred_check_branch
      %28 = sbr.rel (0) target = $region5
    $region4: #{tpu_custom_call.1} parent=1 // pred_region
      %s30 = ssub.s32 128, 128
      %31 = vsyncadd [#allocation3], %s30
      %s33 = sshll.u32 [#allocation2], 4
      %s34 = int_to_ptr.vmem [resolvable:$true] %s33
      %36 = dma.hbm_to_vmem [thread:$0]  %s0, 128, %s34, [#allocation3]
    $region5: #{tpu_custom_call.1} parent=1 // pred_fallthru
      _
    // Predicated region
    $region6: #{tpu_custom_call.1} parent=1 // pred_check
      _
    $region7: #{tpu_custom_call.1} parent=1 // pred_check_branch
      %38 = sbr.rel (0) target = $region9
    $region8: #{tpu_custom_call.1} parent=1 // pred_region
      %s40 = ssub.s32 128, 128
      %41 = vsyncadd [#allocation6], %s40
      %s43 = sshll.u32 [#allocation5], 4
      %s44 = int_to_ptr.vmem [resolvable:$true] %s43
      %46 = dma.hbm_to_vmem [thread:$0]  %s1, 128, %s44, [#allocation6]
    $region9: #{tpu_custom_call.1} parent=1 // pred_fallthru
      _
    // Predicated region
    $region10: #{tpu_custom_call.1} parent=1 // pred_check
      _
    $region11: #{tpu_custom_call.1} parent=1 // pred_check_branch
      %48 = sbr.rel (0) target = $region13
    $region12: #{tpu_custom_call.1} parent=1 // pred_region
      %s50 = ssub.s32 1024, 1024
      %51 = vsyncadd [#allocation6], %s50
      %s52 = sshll.u32 [#allocation7], 4
      %s53 = int_to_ptr.vmem [resolvable:$true] %s52
      %58 = dma.hbm_to_vmem [thread:$0]  %s2, 1024, %s53, [#allocation6], 128, 128, 8
    $region13: #{tpu_custom_call.1} parent=1 // pred_fallthru
      _
    // Predicated region
    $region14: #{tpu_custom_call.1} parent=1 // pred_check
      _
    $region15: #{tpu_custom_call.1} parent=1 // pred_check_branch
      %60 = sbr.rel (0) target = $region17
    $region16: #{tpu_custom_call.1} parent=1 // pred_region
      %s62 = ssub.s32 1024, 1024
      %63 = vsyncadd [#allocation9], %s62
      %s64 = sshll.u32 [#allocation8], 4
      %s65 = int_to_ptr.vmem [resolvable:$true] %s64
      %70 = dma.hbm_to_vmem [thread:$0]  %s3, 1024, %s65, [#allocation9], 128, 128, 8
    $region17: #{tpu_custom_call.1} parent=1 // pred_fallthru
      _
    // Predicated region
    $region18: #{tpu_custom_call.1} parent=1 // pred_check
      _
    $region19: #{tpu_custom_call.1} parent=1 // pred_check_branch
      %72 = sbr.rel (0) target = $region21
    $region20: #{tpu_custom_call.1} parent=1 // pred_region
      %s74 = ssub.s32 8192, 8192
      %75 = vsyncadd [#allocation9], %s74
      %s76 = sshll.u32 [#allocation10], 4
      %s77 = int_to_ptr.vmem [resolvable:$true] %s76
      %82 = dma.hbm_to_vmem [thread:$0]  %s4, 8192, %s77, [#allocation9], 512, 512, 32
    $region21: #{tpu_custom_call.1} parent=1 // pred_fallthru
      _
    // Predicated region
    $region22: #{tpu_custom_call.1} parent=1 // pred_check
      _
    $region23: #{tpu_custom_call.1} parent=1 // pred_check_branch
      %84 = sbr.rel (0) target = $region25
    $region24: #{tpu_custom_call.1} parent=1 // pred_region
      _
    $region25: #{tpu_custom_call.1} parent=1 // pred_fallthru
      _
    // Predicated region
    $region26: #{tpu_custom_call.1} parent=1 // pred_check
      _
    $region27: #{tpu_custom_call.1} parent=1 // pred_check_branch
      %86 = sbr.rel (0) target = $region29
    $region28: #{tpu_custom_call.1} parent=1 // pred_region
      %s88 = ssub.s32 2048, 2048
      %89 = vsyncadd [#allocation12], %s88
      %s90 = sshll.u32 [#allocation11], 4
      %s91 = int_to_ptr.vmem [resolvable:$true] %s90
      %96 = dma.hbm_to_vmem [thread:$0]  %s6, 2048, %s91, [#allocation12], 128, 128, 8
    $region29: #{tpu_custom_call.1} parent=1 // pred_fallthru
      _
    // Predicated region
    $region30: #{tpu_custom_call.1} parent=1 // pred_check
      _
    $region31: #{tpu_custom_call.1} parent=1 // pred_check_branch
      %98 = sbr.rel (0) target = $region33
    $region32: #{tpu_custom_call.1} parent=1 // pred_region
      %s100 = ssub.s32 6144, 6144
      %101 = vsyncadd [#allocation12], %s100
      %s102 = sshll.u32 [#allocation13], 4
      %s103 = int_to_ptr.vmem [resolvable:$true] %s102
      %108 = dma.hbm_to_vmem [thread:$0]  %s7, 6144, %s103, [#allocation12], 384, 384, 24
    $region33: #{tpu_custom_call.1} parent=1 // pred_fallthru
      _
    // Predicated region
    $region34: #{tpu_custom_call.1} parent=1 // pred_check
      _
    $region35: #{tpu_custom_call.1} parent=1 // pred_check_branch
      %110 = sbr.rel (0) target = $region37
    $region36: #{tpu_custom_call.1} parent=1 // pred_region
      _
    $region37: #{tpu_custom_call.1} parent=1 // pred_fallthru
      _
    // Predicated region
    $region38: #{tpu_custom_call.1} parent=1 // pred_check
      _
    $region39: #{tpu_custom_call.1} parent=1 // pred_check_branch
      %112 = sbr.rel (0) target = $region41
    $region40: #{tpu_custom_call.1} parent=1 // pred_region
      %s114 = ssub.s32 2048, 2048
      %115 = vsyncadd [#allocation15], %s114
      %s116 = sshll.u32 [#allocation14], 4
      %s117 = int_to_ptr.vmem [resolvable:$true] %s116
      %122 = dma.hbm_to_vmem [thread:$0]  %s9, 2048, %s117, [#allocation15], 128, 128, 8
    $region41: #{tpu_custom_call.1} parent=1 // pred_fallthru
      _
    // Predicated region
    $region42: #{tpu_custom_call.1} parent=1 // pred_check
      _
    $region43: #{tpu_custom_call.1} parent=1 // pred_check_branch
      %124 = sbr.rel (0) target = $region45
    $region44: #{tpu_custom_call.1} parent=1 // pred_region
      _
    $region45: #{tpu_custom_call.1} parent=1 // pred_fallthru
      _
    // Predicated region
    $region46: #{tpu_custom_call.1} parent=1 // pred_check
      _
    $region47: #{tpu_custom_call.1} parent=1 // pred_check_branch
      %126 = sbr.rel (0) target = $region49
    $region48: #{tpu_custom_call.1} parent=1 // pred_region
      _
    $region49: #{tpu_custom_call.1} parent=1 // pred_fallthru
      _
    // Predicated region
    $region50: #{tpu_custom_call.1} parent=1 // pred_check
      _
    $region51: #{tpu_custom_call.1} parent=1 // pred_check_branch
      %128 = sbr.rel (0) target = $region53
    $region52: #{tpu_custom_call.1} parent=1 // pred_region
      %129 = dma.done [#allocation3], 128
    $region53: #{tpu_custom_call.1} parent=1 // pred_fallthru
      _
    // Predicated region
    $region54: #{tpu_custom_call.1} parent=1 // pred_check
      _
    $region55: #{tpu_custom_call.1} parent=1 // pred_check_branch
      %131 = sbr.rel (0) target = $region57
    $region56: #{tpu_custom_call.1} parent=1 // pred_region
      %132 = dma.done [#allocation6], 128
    $region57: #{tpu_custom_call.1} parent=1 // pred_fallthru
      _
    // Predicated region
    $region58: #{tpu_custom_call.1} parent=1 // pred_check
      _
    $region59: #{tpu_custom_call.1} parent=1 // pred_check_branch
      %134 = sbr.rel (0) target = $region61
    $region60: #{tpu_custom_call.1} parent=1 // pred_region
      %135 = dma.done [#allocation6], 1024
    $region61: #{tpu_custom_call.1} parent=1 // pred_fallthru
      _
    // Predicated region
    $region62: #{tpu_custom_call.1} parent=1 // pred_check
      _
    $region63: #{tpu_custom_call.1} parent=1 // pred_check_branch
      %137 = sbr.rel (0) target = $region65
    $region64: #{tpu_custom_call.1} parent=1 // pred_region
      %138 = dma.done [#allocation9], 1024
    $region65: #{tpu_custom_call.1} parent=1 // pred_fallthru
      _
    // Predicated region
    $region66: #{tpu_custom_call.1} parent=1 // pred_check
      _
    $region67: #{tpu_custom_call.1} parent=1 // pred_check_branch
      %140 = sbr.rel (0) target = $region69
    $region68: #{tpu_custom_call.1} parent=1 // pred_region
      %141 = dma.done [#allocation9], 8192
    $region69: #{tpu_custom_call.1} parent=1 // pred_fallthru
      _
    // Predicated region
    $region70: #{tpu_custom_call.1} parent=1 // pred_check
      _
    $region71: #{tpu_custom_call.1} parent=1 // pred_check_branch
      %143 = sbr.rel (0) target = $region73
    $region72: #{tpu_custom_call.1} parent=1 // pred_region
      %144 = dma.done [#allocation12], 2048
    $region73: #{tpu_custom_call.1} parent=1 // pred_fallthru
      _
    // Predicated region
    $region74: #{tpu_custom_call.1} parent=1 // pred_check
      _
    $region75: #{tpu_custom_call.1} parent=1 // pred_check_branch
      %146 = sbr.rel (0) target = $region77
    $region76: #{tpu_custom_call.1} parent=1 // pred_region
      %147 = dma.done [#allocation12], 6144
    $region77: #{tpu_custom_call.1} parent=1 // pred_fallthru
      _
    // Predicated region
    $region78: #{tpu_custom_call.1} parent=1 // pred_check
      _
    $region79: #{tpu_custom_call.1} parent=1 // pred_check_branch
      %149 = sbr.rel (0) target = $region81
    $region80: #{tpu_custom_call.1} parent=1 // pred_region
      %150 = dma.done [#allocation15], 2048
    $region81: #{tpu_custom_call.1} parent=1 // pred_fallthru
      _
    %v151 = vld [vmem:[#allocation7] sm:$0xff]
    %v152 = vld [vmem:[#allocation7 + $0x8] sm:$0xff]
    %v153 = vld [vmem:[#allocation7 + $0x10] sm:$0xff]
    %v154 = vld [vmem:[#allocation7 + $0x18] sm:$0xff]
    %v155 = vld [vmem:[#allocation7 + $0x20] sm:$0xff]
    %v156 = vld [vmem:[#allocation7 + $0x28] sm:$0xff]
    %v157 = vld [vmem:[#allocation7 + $0x30] sm:$0xff]
    %v158 = vld [vmem:[#allocation7 + $0x38] sm:$0xff]
    %v159 = vld [vmem:[#allocation8] sm:$0xff]
    %v160 = vld [vmem:[#allocation8 + $0x8] sm:$0xff]
    %v161 = vld [vmem:[#allocation8 + $0x10] sm:$0xff]
    %v162 = vld [vmem:[#allocation8 + $0x18] sm:$0xff]
    %v163 = vld [vmem:[#allocation8 + $0x20] sm:$0xff]
    %v164 = vld [vmem:[#allocation8 + $0x28] sm:$0xff]
    %v165 = vld [vmem:[#allocation8 + $0x30] sm:$0xff]
    %v166 = vld [vmem:[#allocation8 + $0x38] sm:$0xff]
    %v167 = vld [vmem:[#allocation10] sm:$0xff]
    %v168 = vld [vmem:[#allocation10 + $0x8] sm:$0xff]
    %v169 = vld [vmem:[#allocation10 + $0x10] sm:$0xff]
    %v170 = vld [vmem:[#allocation10 + $0x18] sm:$0xff]
    %v171 = vld [vmem:[#allocation10 + $0x20] sm:$0xff]
    %v172 = vld [vmem:[#allocation10 + $0x28] sm:$0xff]
    %v173 = vld [vmem:[#allocation10 + $0x30] sm:$0xff]
    %v174 = vld [vmem:[#allocation10 + $0x38] sm:$0xff]
    %v175 = vld [vmem:[#allocation10 + $0x40] sm:$0xff]
    %v176 = vld [vmem:[#allocation10 + $0x48] sm:$0xff]
    %v177 = vld [vmem:[#allocation10 + $0x50] sm:$0xff]
    %v178 = vld [vmem:[#allocation10 + $0x58] sm:$0xff]
    %v179 = vld [vmem:[#allocation10 + $0x60] sm:$0xff]
    %v180 = vld [vmem:[#allocation10 + $0x68] sm:$0xff]
    %v181 = vld [vmem:[#allocation10 + $0x70] sm:$0xff]
    %v182 = vld [vmem:[#allocation10 + $0x78] sm:$0xff]
    %v183 = vld [vmem:[#allocation10 + $0x80] sm:$0xff]
    %v184 = vld [vmem:[#allocation10 + $0x88] sm:$0xff]
    %v185 = vld [vmem:[#allocation10 + $0x90] sm:$0xff]
    %v186 = vld [vmem:[#allocation10 + $0x98] sm:$0xff]
    %v187 = vld [vmem:[#allocation10 + $0xa0] sm:$0xff]
    %v188 = vld [vmem:[#allocation10 + $0xa8] sm:$0xff]
    %v189 = vld [vmem:[#allocation10 + $0xb0] sm:$0xff]
    %v190 = vld [vmem:[#allocation10 + $0xb8] sm:$0xff]
    %v191 = vld [vmem:[#allocation10 + $0xc0] sm:$0xff]
    %v192 = vld [vmem:[#allocation10 + $0xc8] sm:$0xff]
    %v193 = vld [vmem:[#allocation10 + $0xd0] sm:$0xff]
    %v194 = vld [vmem:[#allocation10 + $0xd8] sm:$0xff]
    %v195 = vld [vmem:[#allocation10 + $0xe0] sm:$0xff]
    %v196 = vld [vmem:[#allocation10 + $0xe8] sm:$0xff]
    %v197 = vld [vmem:[#allocation10 + $0xf0] sm:$0xff]
    %v198 = vld [vmem:[#allocation10 + $0xf8] sm:$0xff]
    %v199 = vld [vmem:[#allocation10 + $0x100] sm:$0xff]
    %v200 = vld [vmem:[#allocation10 + $0x108] sm:$0xff]
    %v201 = vld [vmem:[#allocation10 + $0x110] sm:$0xff]
    %v202 = vld [vmem:[#allocation10 + $0x118] sm:$0xff]
    %v203 = vld [vmem:[#allocation10 + $0x120] sm:$0xff]
    %v204 = vld [vmem:[#allocation10 + $0x128] sm:$0xff]
    %v205 = vld [vmem:[#allocation10 + $0x130] sm:$0xff]
    %v206 = vld [vmem:[#allocation10 + $0x138] sm:$0xff]
    %v207 = vld [vmem:[#allocation10 + $0x140] sm:$0xff]
    %v208 = vld [vmem:[#allocation10 + $0x148] sm:$0xff]
    %v209 = vld [vmem:[#allocation10 + $0x150] sm:$0xff]
    %v210 = vld [vmem:[#allocation10 + $0x158] sm:$0xff]
    %v211 = vld [vmem:[#allocation10 + $0x160] sm:$0xff]
    %v212 = vld [vmem:[#allocation10 + $0x168] sm:$0xff]
    %v213 = vld [vmem:[#allocation10 + $0x170] sm:$0xff]
    %v214 = vld [vmem:[#allocation10 + $0x178] sm:$0xff]
    %v215 = vld [vmem:[#allocation10 + $0x180] sm:$0xff]
    %v216 = vld [vmem:[#allocation10 + $0x188] sm:$0xff]
    %v217 = vld [vmem:[#allocation10 + $0x190] sm:$0xff]
    %v218 = vld [vmem:[#allocation10 + $0x198] sm:$0xff]
    %v219 = vld [vmem:[#allocation10 + $0x1a0] sm:$0xff]
    %v220 = vld [vmem:[#allocation10 + $0x1a8] sm:$0xff]
    %v221 = vld [vmem:[#allocation10 + $0x1b0] sm:$0xff]
    %v222 = vld [vmem:[#allocation10 + $0x1b8] sm:$0xff]
    %v223 = vld [vmem:[#allocation10 + $0x1c0] sm:$0xff]
    %v224 = vld [vmem:[#allocation10 + $0x1c8] sm:$0xff]
    %v225 = vld [vmem:[#allocation10 + $0x1d0] sm:$0xff]
    %v226 = vld [vmem:[#allocation10 + $0x1d8] sm:$0xff]
    %v227 = vld [vmem:[#allocation10 + $0x1e0] sm:$0xff]
    %v228 = vld [vmem:[#allocation10 + $0x1e8] sm:$0xff]
    %v229 = vld [vmem:[#allocation10 + $0x1f0] sm:$0xff]
    %v230 = vld [vmem:[#allocation10 + $0x1f8] sm:$0xff]
    %v231 = vld [vmem:[%s5] sm:$0x1]
    %v232 = vld [vmem:[#allocation11] sm:$0xff]
    %v233 = vld [vmem:[#allocation11 + $0x8] sm:$0xff]
    %v234 = vld [vmem:[#allocation11 + $0x10] sm:$0xff]
    %v235 = vld [vmem:[#allocation11 + $0x18] sm:$0xff]
    %v236 = vld [vmem:[#allocation11 + $0x20] sm:$0xff]
    %v237 = vld [vmem:[#allocation11 + $0x28] sm:$0xff]
    %v238 = vld [vmem:[#allocation11 + $0x30] sm:$0xff]
    %v239 = vld [vmem:[#allocation11 + $0x38] sm:$0xff]
    %v240 = vld [vmem:[#allocation11 + $0x40] sm:$0xff]
    %v241 = vld [vmem:[#allocation11 + $0x48] sm:$0xff]
    %v242 = vld [vmem:[#allocation11 + $0x50] sm:$0xff]
    %v243 = vld [vmem:[#allocation11 + $0x58] sm:$0xff]
    %v244 = vld [vmem:[#allocation11 + $0x60] sm:$0xff]
    %v245 = vld [vmem:[#allocation11 + $0x68] sm:$0xff]
    %v246 = vld [vmem:[#allocation11 + $0x70] sm:$0xff]
    %v247 = vld [vmem:[#allocation11 + $0x78] sm:$0xff]
    %v248 = vld [vmem:[#allocation13] sm:$0xff]
    %v249 = vld [vmem:[#allocation13 + $0x8] sm:$0xff]
    %v250 = vld [vmem:[#allocation13 + $0x10] sm:$0xff]
    %v251 = vld [vmem:[#allocation13 + $0x18] sm:$0xff]
    %v252 = vld [vmem:[#allocation13 + $0x20] sm:$0xff]
    %v253 = vld [vmem:[#allocation13 + $0x28] sm:$0xff]
    %v254 = vld [vmem:[#allocation13 + $0x30] sm:$0xff]
    %v255 = vld [vmem:[#allocation13 + $0x38] sm:$0xff]
    %v256 = vld [vmem:[#allocation13 + $0x40] sm:$0xff]
    %v257 = vld [vmem:[#allocation13 + $0x48] sm:$0xff]
    %v258 = vld [vmem:[#allocation13 + $0x50] sm:$0xff]
    %v259 = vld [vmem:[#allocation13 + $0x58] sm:$0xff]
    %v260 = vld [vmem:[#allocation13 + $0x60] sm:$0xff]
    %v261 = vld [vmem:[#allocation13 + $0x68] sm:$0xff]
    %v262 = vld [vmem:[#allocation13 + $0x70] sm:$0xff]
    %v263 = vld [vmem:[#allocation13 + $0x78] sm:$0xff]
    %v264 = vld [vmem:[#allocation13 + $0x80] sm:$0xff]
    %v265 = vld [vmem:[#allocation13 + $0x88] sm:$0xff]
    %v266 = vld [vmem:[#allocation13 + $0x90] sm:$0xff]
    %v267 = vld [vmem:[#allocation13 + $0x98] sm:$0xff]
    %v268 = vld [vmem:[#allocation13 + $0xa0] sm:$0xff]
    %v269 = vld [vmem:[#allocation13 + $0xa8] sm:$0xff]
    %v270 = vld [vmem:[#allocation13 + $0xb0] sm:$0xff]
    %v271 = vld [vmem:[#allocation13 + $0xb8] sm:$0xff]
    %v272 = vld [vmem:[#allocation13 + $0xc0] sm:$0xff]
    %v273 = vld [vmem:[#allocation13 + $0xc8] sm:$0xff]
    %v274 = vld [vmem:[#allocation13 + $0xd0] sm:$0xff]
    %v275 = vld [vmem:[#allocation13 + $0xd8] sm:$0xff]
    %v276 = vld [vmem:[#allocation13 + $0xe0] sm:$0xff]
    %v277 = vld [vmem:[#allocation13 + $0xe8] sm:$0xff]
    %v278 = vld [vmem:[#allocation13 + $0xf0] sm:$0xff]
    %v279 = vld [vmem:[#allocation13 + $0xf8] sm:$0xff]
    %v280 = vld [vmem:[#allocation13 + $0x100] sm:$0xff]
    %v281 = vld [vmem:[#allocation13 + $0x108] sm:$0xff]
    %v282 = vld [vmem:[#allocation13 + $0x110] sm:$0xff]
    %v283 = vld [vmem:[#allocation13 + $0x118] sm:$0xff]
    %v284 = vld [vmem:[#allocation13 + $0x120] sm:$0xff]
    %v285 = vld [vmem:[#allocation13 + $0x128] sm:$0xff]
    %v286 = vld [vmem:[#allocation13 + $0x130] sm:$0xff]
    %v287 = vld [vmem:[#allocation13 + $0x138] sm:$0xff]
    %v288 = vld [vmem:[#allocation13 + $0x140] sm:$0xff]
    %v289 = vld [vmem:[#allocation13 + $0x148] sm:$0xff]
    %v290 = vld [vmem:[#allocation13 + $0x150] sm:$0xff]
    %v291 = vld [vmem:[#allocation13 + $0x158] sm:$0xff]
    %v292 = vld [vmem:[#allocation13 + $0x160] sm:$0xff]
    %v293 = vld [vmem:[#allocation13 + $0x168] sm:$0xff]
    %v294 = vld [vmem:[#allocation13 + $0x170] sm:$0xff]
    %v295 = vld [vmem:[#allocation13 + $0x178] sm:$0xff]
    %v296 = vld [vmem:[%s8] ss:$2 sm:$0x7]
    %s297 = scalar_lea.vmem %s8, 1
    %v298 = vld [vmem:[%s297] ss:$2 sm:$0x7]
    %v299 = vld [vmem:[#allocation14] sm:$0xff]
    %v300 = vld [vmem:[#allocation14 + $0x8] sm:$0xff]
    %v301 = vld [vmem:[#allocation14 + $0x10] sm:$0xff]
    %v302 = vld [vmem:[#allocation14 + $0x18] sm:$0xff]
    %v303 = vld [vmem:[#allocation14 + $0x20] sm:$0xff]
    %v304 = vld [vmem:[#allocation14 + $0x28] sm:$0xff]
    %v305 = vld [vmem:[#allocation14 + $0x30] sm:$0xff]
    %v306 = vld [vmem:[#allocation14 + $0x38] sm:$0xff]
    %v307 = vld [vmem:[#allocation14 + $0x40] sm:$0xff]
    %v308 = vld [vmem:[#allocation14 + $0x48] sm:$0xff]
    %v309 = vld [vmem:[#allocation14 + $0x50] sm:$0xff]
    %v310 = vld [vmem:[#allocation14 + $0x58] sm:$0xff]
    %v311 = vld [vmem:[#allocation14 + $0x60] sm:$0xff]
    %v312 = vld [vmem:[#allocation14 + $0x68] sm:$0xff]
    %v313 = vld [vmem:[#allocation14 + $0x70] sm:$0xff]
    %v314 = vld [vmem:[#allocation14 + $0x78] sm:$0xff]
    %v315 = vld [vmem:[%s10] sm:$0x1]
    %v316 = vld [vmem:[%s11] sm:$0x1]
    %v317 = vld [vmem:[#allocation5] sm:$0xff]
    %318 = vmatprep.subr.mxu0 %v168
    %319 = vmatpush1.msra.mxu0 %v167
    %320 = vmatprep.subr.mxu0 %v172
    %321 = vmatpush1.msra.mxu0 %v171
    %322 = vmatprep.subr.mxu0 %v176
    %323 = vmatpush1.msra.mxu0 %v175
    %324 = vmatprep.subr.mxu0 %v180
    %325 = vmatpush1.msra.mxu0 %v179
    %326 = vmatprep.subr.mxu0 %v184
    %327 = vmatpush1.msra.mxu0 %v183
    %328 = vmatprep.subr.mxu0 %v188
    %329 = vmatpush1.msra.mxu0 %v187
    %330 = vmatprep.subr.mxu0 %v192
    %331 = vmatpush1.msra.mxu0 %v191
    %332 = vmatprep.subr.mxu0 %v196
    %333 = vmatpush1.msra.mxu0 %v195
    %334 = vmatprep.subr.mxu0 %v200
    %335 = vmatpush1.msra.mxu0 %v199
    %336 = vmatprep.subr.mxu0 %v204
    %337 = vmatpush1.msra.mxu0 %v203
    %338 = vmatprep.subr.mxu0 %v208
    %339 = vmatpush1.msra.mxu0 %v207
    %340 = vmatprep.subr.mxu0 %v212
    %341 = vmatpush1.msra.mxu0 %v211
    %342 = vmatprep.subr.mxu0 %v216
    %343 = vmatpush1.msra.mxu0 %v215
    %344 = vmatprep.subr.mxu0 %v220
    %345 = vmatpush1.msra.mxu0 %v219
    %346 = vmatprep.subr.mxu0 %v224
    %347 = vmatpush1.msra.mxu0 %v223
    %348 = vmatprep.subr.mxu0 %v228
    %349 = vmatpush1.msra.mxu0 %v227
    %350 = vmatprep.subr.mxu0 0.0
    %351 = vmatpush1.msra.mxu0 0.0
    %352 = vmatprep.subr.mxu0 0.0
    %353 = vmatpush1.msra.mxu0 0.0
    %354 = vmatprep.subr.mxu0 0.0
    %355 = vmatpush1.msra.mxu0 0.0
    %356 = vmatprep.subr.mxu0 0.0
    %357 = vmatpush1.msra.mxu0 0.0
    %358 = vmatprep.subr.mxu0 0.0
    %359 = vmatpush1.msra.mxu0 0.0
    %360 = vmatprep.subr.mxu0 0.0
    %361 = vmatpush1.msra.mxu0 0.0
    %362 = vmatprep.subr.mxu0 0.0
    %363 = vmatpush1.msra.mxu0 0.0
    %364 = vmatprep.subr.mxu0 0.0
    %365 = vmatpush1.msra.mxu0 0.0
    %366 = vmatprep.subr.mxu0 0.0
    %367 = vmatpush1.msra.mxu0 0.0
    %368 = vmatprep.subr.mxu0 0.0
    %369 = vmatpush1.msra.mxu0 0.0
    %370 = vmatprep.subr.mxu0 0.0
    %371 = vmatpush1.msra.mxu0 0.0
    %372 = vmatprep.subr.mxu0 0.0
    %373 = vmatpush1.msra.mxu0 0.0
    %374 = vmatprep.subr.mxu0 0.0
    %375 = vmatpush1.msra.mxu0 0.0
    %376 = vmatprep.subr.mxu0 0.0
    %377 = vmatpush1.msra.mxu0 0.0
    %378 = vmatprep.subr.mxu0 0.0
    %379 = vmatpush1.msra.mxu0 0.0
    %380 = vmatprep.subr.mxu0 0.0
    %381 = vmatpush1.msra.mxu0 0.0
    %382 = vmatprep.mubr.f32.mxu0 0.0
    %383 = vmatmul.mubr.f32.gmra.mrb[0].mxu0 %v317
    %v384 = vpop.f32.mrb[0].mxu0
    %v385 = vadd.f32 0.0, %v384
    %v386 = vpop.f32.mrb[0].mxu0
    %v387 = vadd.f32 0.0, %v386
    %388 = vdwg.mxu0
    %389 = vmatprep.subr.mxu0 %v170
    %390 = vmatpush1.msra.mxu0 %v169
    %391 = vmatprep.subr.mxu0 %v174
    %392 = vmatpush1.msra.mxu0 %v173
    %393 = vmatprep.subr.mxu0 %v178
    %394 = vmatpush1.msra.mxu0 %v177
    %395 = vmatprep.subr.mxu0 %v182
    %396 = vmatpush1.msra.mxu0 %v181
    %397 = vmatprep.subr.mxu0 %v186
    %398 = vmatpush1.msra.mxu0 %v185
    %399 = vmatprep.subr.mxu0 %v190
    %400 = vmatpush1.msra.mxu0 %v189
    %401 = vmatprep.subr.mxu0 %v194
    %402 = vmatpush1.msra.mxu0 %v193
    %403 = vmatprep.subr.mxu0 %v198
    %404 = vmatpush1.msra.mxu0 %v197
    %405 = vmatprep.subr.mxu0 %v202
    %406 = vmatpush1.msra.mxu0 %v201
    %407 = vmatprep.subr.mxu0 %v206
    %408 = vmatpush1.msra.mxu0 %v205
    %409 = vmatprep.subr.mxu0 %v210
    %410 = vmatpush1.msra.mxu0 %v209
    %411 = vmatprep.subr.mxu0 %v214
    %412 = vmatpush1.msra.mxu0 %v213
    %413 = vmatprep.subr.mxu0 %v218
    %414 = vmatpush1.msra.mxu0 %v217
    %415 = vmatprep.subr.mxu0 %v222
    %416 = vmatpush1.msra.mxu0 %v221
    %417 = vmatprep.subr.mxu0 %v226
    %418 = vmatpush1.msra.mxu0 %v225
    %419 = vmatprep.subr.mxu0 %v230
    %420 = vmatpush1.msra.mxu0 %v229
    %421 = vmatprep.subr.mxu0 0.0
    %422 = vmatpush1.msra.mxu0 0.0
    %423 = vmatprep.subr.mxu0 0.0
    %424 = vmatpush1.msra.mxu0 0.0
    %425 = vmatprep.subr.mxu0 0.0
    %426 = vmatpush1.msra.mxu0 0.0
    %427 = vmatprep.subr.mxu0 0.0
    %428 = vmatpush1.msra.mxu0 0.0
    %429 = vmatprep.subr.mxu0 0.0
    %430 = vmatpush1.msra.mxu0 0.0
    %431 = vmatprep.subr.mxu0 0.0
    %432 = vmatpush1.msra.mxu0 0.0
    %433 = vmatprep.subr.mxu0 0.0
    %434 = vmatpush1.msra.mxu0 0.0
    %435 = vmatprep.subr.mxu0 0.0
    %436 = vmatpush1.msra.mxu0 0.0
    %437 = vmatprep.subr.mxu0 0.0
    %438 = vmatpush1.msra.mxu0 0.0
    %439 = vmatprep.subr.mxu0 0.0
    %440 = vmatpush1.msra.mxu0 0.0
    %441 = vmatprep.subr.mxu0 0.0
    %442 = vmatpush1.msra.mxu0 0.0
    %443 = vmatprep.subr.mxu0 0.0
    %444 = vmatpush1.msra.mxu0 0.0
    %445 = vmatprep.subr.mxu0 0.0
    %446 = vmatpush1.msra.mxu0 0.0
    %447 = vmatprep.subr.mxu0 0.0
    %448 = vmatpush1.msra.mxu0 0.0
    %449 = vmatprep.subr.mxu0 0.0
    %450 = vmatpush1.msra.mxu0 0.0
    %451 = vmatprep.subr.mxu0 0.0
    %452 = vmatpush1.msra.mxu0 0.0
    %453 = vmatprep.mubr.f32.mxu0 0.0
    %454 = vmatmul.mubr.f32.gmra.mrb[0].mxu0 %v317
    %v455 = vpop.f32.mrb[0].mxu0
    %v456 = vadd.f32 0.0, %v455
    %v457 = vpop.f32.mrb[0].mxu0
    %v458 = vadd.f32 0.0, %v457
    %459 = vdwg.mxu0
    %v461 = vlaneseq
    %v462 = vshrl.u32 %v461, 7
    %v463 = vsub.s32 0, %v462
    %v464 = vrot.slane %v298, %v463
    %v465 = vlaneseq
    %v466 = vshrl.u32 %v465, 7
    %v467 = vsub.s32 1, %v466
    %v468 = vrot.slane %v298, %v467
    %v469 = vlaneseq
    %v470 = vshrl.u32 %v469, 7
    %v471 = vsub.s32 2, %v470
    %v472 = vrot.slane %v298, %v471
    %v476 = vadd.f32 %v387, %v464
    %v477 = vadd.f32 %v456, %v468
    %v478 = vadd.f32 %v458, %v472
    %v480 = vcombine.high %v385, %v385
    %v482 = vunpack.c.l.s4 1966171168
    %v483 = vunpack.c.0.s8 %v482
    %v484 = vlaneseq
    %v485 = vshrl.u32 %v484, 7
    %v486 = vsub.s32 %v483, %v485
    %v487 = vrot.slane %v385, %v486
    %v489 = vunpack.c.l.s4 1966171168
    %v490 = vunpack.c.0.s8 %v489
    %v491 = vlaneseq
    %v492 = vshrl.u32 %v491, 7
    %v493 = vsub.s32 %v490, %v492
    %v494 = vrot.slane %v480, %v493
    %v495 = vcombine.high %v487, %v487
    %v496 = vcombine.high %v494, %v494
    %v498 = vunpack.c.l.s4 1966171168
    %v499 = vunpack.c.0.s8 %v498
    %v500 = vlaneseq
    %v501 = vshrl.u32 %v500, 7
    %v502 = vsub.s32 %v499, %v501
    %v503 = vrot.slane %v487, %v502
    %v505 = vunpack.c.l.s4 1966171168
    %v506 = vunpack.c.0.s8 %v505
    %v507 = vlaneseq
    %v508 = vshrl.u32 %v507, 7
    %v509 = vsub.s32 %v506, %v508
    %v510 = vrot.slane %v494, %v509
    %v512 = vunpack.c.l.s4 1966171168
    %v513 = vunpack.c.0.s8 %v512
    %v514 = vlaneseq
    %v515 = vshrl.u32 %v514, 7
    %v516 = vsub.s32 %v513, %v515
    %v517 = vrot.slane %v495, %v516
    %v519 = vunpack.c.l.s4 1966171168
    %v520 = vunpack.c.0.s8 %v519
    %v521 = vlaneseq
    %v522 = vshrl.u32 %v521, 7
    %v523 = vsub.s32 %v520, %v522
    %v524 = vrot.slane %v496, %v523
    %v525 = vcombine.high %v503, %v503
    %v526 = vcombine.high %v510, %v510
    %v527 = vcombine.high %v517, %v517
    %v528 = vcombine.high %v524, %v524
    %v529 = vlaneseq
    %v530 = vshrl.u32 %v529, 7
    %v531 = vsub.s32 0, %v530
    %v532 = vrot.slane %v503, %v531
    %v533 = vlaneseq
    %v534 = vshrl.u32 %v533, 7
    %v535 = vsub.s32 0, %v534
    %v536 = vrot.slane %v517, %v535
    %v537 = vlaneseq
    %v538 = vshrl.u32 %v537, 7
    %v539 = vsub.s32 0, %v538
    %v540 = vrot.slane %v525, %v539
    %v541 = vlaneseq
    %v542 = vshrl.u32 %v541, 7
    %v543 = vsub.s32 0, %v542
    %v544 = vrot.slane %v527, %v543
    %v545 = vlaneseq
    %v546 = vshrl.u32 %v545, 7
    %v547 = vsub.s32 0, %v546
    %v548 = vrot.slane %v510, %v547
    %v549 = vlaneseq
    %v550 = vshrl.u32 %v549, 7
    %v551 = vsub.s32 0, %v550
    %v552 = vrot.slane %v524, %v551
    %v553 = vlaneseq
    %v554 = vshrl.u32 %v553, 7
    %v555 = vsub.s32 0, %v554
    %v556 = vrot.slane %v526, %v555
    %v557 = vlaneseq
    %v558 = vshrl.u32 %v557, 7
    %v559 = vsub.s32 0, %v558
    %v560 = vrot.slane %v528, %v559
    %v569 = vadd.f32 %v532, %v159
    %v570 = vadd.f32 %v536, %v160
    %v571 = vadd.f32 %v540, %v161
    %v572 = vadd.f32 %v544, %v162
    %v573 = vadd.f32 %v548, %v163
    %v574 = vadd.f32 %v552, %v164
    %v575 = vadd.f32 %v556, %v165
    %v576 = vadd.f32 %v560, %v166
    %v577 = vtanh.pop %v569
    %v578 = vtanh.pop %v570
    %v579 = vtanh.pop %v571
    %v580 = vtanh.pop %v572
    %v581 = vtanh.pop %v573
    %v582 = vtanh.pop %v574
    %v583 = vtanh.pop %v575
    %v584 = vtanh.pop %v576
    %v586 = vlaneseq
    %v587 = vshrl.u32 %v586, 7
    %v588 = vsub.s32 0, %v587
    %v589 = vrot.slane %v231, %v588
    %v591 = vmul.f32 %v577, %v589
    %v592 = vmul.f32 %v578, %v589
    %v593 = vmul.f32 %v579, %v589
    %v594 = vmul.f32 %v580, %v589
    %v595 = vmul.f32 %v581, %v589
    %v596 = vmul.f32 %v582, %v589
    %v597 = vmul.f32 %v583, %v589
    %v598 = vmul.f32 %v584, %v589
    %599 = vadd.xlane.f32.xlu0 %v591
    %v600 = vpop.xlane.xlu0 %599
    %601 = vadd.xlane.f32.xlu0 %v592
    %v602 = vpop.xlane.xlu0 %601
    %603 = vadd.xlane.f32.xlu0 %v593
    %v604 = vpop.xlane.xlu0 %603
    %605 = vadd.xlane.f32.xlu0 %v594
    %v606 = vpop.xlane.xlu0 %605
    %607 = vadd.xlane.f32.xlu0 %v595
    %v608 = vpop.xlane.xlu0 %607
    %609 = vadd.xlane.f32.xlu0 %v596
    %v610 = vpop.xlane.xlu0 %609
    %611 = vadd.xlane.f32.xlu0 %v597
    %v612 = vpop.xlane.xlu0 %611
    %613 = vadd.xlane.f32.xlu0 %v598
    %v614 = vpop.xlane.xlu0 %613
    %v616 = vlaneseq
    %v617 = vshrl.u32 %v616, 7
    %v618 = vsub.s32 0, %v617
    %v619 = vrot.slane %v316, %v618
    %621 = vbcast.lane.b32.xlu0 %v619, 256
    %v622 = vpop.permute.xlu0 %621
    %v624 = vadd.f32 %v600, %v622
    %v625 = vadd.f32 %v602, %v622
    %v626 = vadd.f32 %v604, %v622
    %v627 = vadd.f32 %v606, %v622
    %v628 = vadd.f32 %v608, %v622
    %v629 = vadd.f32 %v610, %v622
    %v630 = vadd.f32 %v612, %v622
    %v631 = vadd.f32 %v614, %v622
    %640 = vset.pattern.permute.xlu0 0
    %641 = vperm.xlu0 %640, %v624
    %v642 = vpop.permute.xlu0 %641
    %643 = vset.pattern.permute.xlu0 0
    %644 = vperm.xlu0 %643, %v625
    %v645 = vpop.permute.xlu0 %644
    %646 = vset.pattern.permute.xlu0 0
    %647 = vperm.xlu0 %646, %v626
    %v648 = vpop.permute.xlu0 %647
    %649 = vset.pattern.permute.xlu0 0
    %650 = vperm.xlu0 %649, %v627
    %v651 = vpop.permute.xlu0 %650
    %652 = vset.pattern.permute.xlu0 0
    %653 = vperm.xlu0 %652, %v628
    %v654 = vpop.permute.xlu0 %653
    %655 = vset.pattern.permute.xlu0 0
    %656 = vperm.xlu0 %655, %v629
    %v657 = vpop.permute.xlu0 %656
    %658 = vset.pattern.permute.xlu0 0
    %659 = vperm.xlu0 %658, %v630
    %v660 = vpop.permute.xlu0 %659
    %661 = vset.pattern.permute.xlu0 0
    %662 = vperm.xlu0 %661, %v631
    %v663 = vpop.permute.xlu0 %662
    %v664 = vlaneseq
    %v665 = vand.u32 %v664, 127
    %v666 = vlaneseq
    %v667 = vshrl.u32 %v666, 7
    %v668 = vsub.s32 %v665, %v667
    %v669 = vrot.slane %v642, %v668
    %v670 = vlaneseq
    %v671 = vshrl.u32 %v670, 7
    %v672 = vsub.s32 %v665, %v671
    %v673 = vrot.slane %v645, %v672
    %v674 = vlaneseq
    %v675 = vshrl.u32 %v674, 7
    %v676 = vsub.s32 %v665, %v675
    %v677 = vrot.slane %v648, %v676
    %v678 = vlaneseq
    %v679 = vshrl.u32 %v678, 7
    %v680 = vsub.s32 %v665, %v679
    %v681 = vrot.slane %v651, %v680
    %v682 = vlaneseq
    %v683 = vshrl.u32 %v682, 7
    %v684 = vsub.s32 %v665, %v683
    %v685 = vrot.slane %v654, %v684
    %v686 = vlaneseq
    %v687 = vshrl.u32 %v686, 7
    %v688 = vsub.s32 %v665, %v687
    %v689 = vrot.slane %v657, %v688
    %v690 = vlaneseq
    %v691 = vshrl.u32 %v690, 7
    %v692 = vsub.s32 %v665, %v691
    %v693 = vrot.slane %v660, %v692
    %v694 = vlaneseq
    %v695 = vshrl.u32 %v694, 7
    %v696 = vsub.s32 %v665, %v695
    %v697 = vrot.slane %v663, %v696
    %vm698 = vcmask 1041409
    %v699 = vsel %vm698, %v673, %v669
    %vm700 = vcmask 1042434
    %v701 = vsel %vm700, %v677, %v699
    %vm702 = vcmask 1043459
    %v703 = vsel %vm702, %v681, %v701
    %vm704 = vcmask 1044484
    %v705 = vsel %vm704, %v685, %v703
    %vm706 = vcmask 1045509
    %v707 = vsel %vm706, %v689, %v705
    %vm708 = vcmask 1046534
    %v709 = vsel %vm708, %v693, %v707
    %vm710 = vcmask 1047559
    %v711 = vsel %vm710, %v697, %v709
    %vm713 = vcmask 64512
    %v714 = vsel %vm713, %v711, -inf
    %715 = vmax.xlane.f32.xlu0 %v714
    %v716 = vpop.xlane.xlu0 %715
    %v718 = vlaneseq
    %v719 = vshrl.u32 %v718, 7
    %v720 = vsub.s32 0, %v719
    %v721 = vrot.slane %v716, %v720
    %v722 = vlaneseq
    %v723 = vshrl.u32 %v722, 7
    %v724 = vsub.s32 1, %v723
    %v725 = vrot.slane %v716, %v724
    %v726 = vlaneseq
    %v727 = vshrl.u32 %v726, 7
    %v728 = vsub.s32 2, %v727
    %v729 = vrot.slane %v716, %v728
    %v730 = vlaneseq
    %v731 = vshrl.u32 %v730, 7
    %v732 = vsub.s32 3, %v731
    %v733 = vrot.slane %v716, %v732
    %v734 = vlaneseq
    %v735 = vshrl.u32 %v734, 7
    %v736 = vsub.s32 4, %v735
    %v737 = vrot.slane %v716, %v736
    %v738 = vlaneseq
    %v739 = vshrl.u32 %v738, 7
    %v740 = vsub.s32 5, %v739
    %v741 = vrot.slane %v716, %v740
    %v742 = vlaneseq
    %v743 = vshrl.u32 %v742, 7
    %v744 = vsub.s32 6, %v743
    %v745 = vrot.slane %v716, %v744
    %v746 = vlaneseq
    %v747 = vshrl.u32 %v746, 7
    %v748 = vsub.s32 7, %v747
    %v749 = vrot.slane %v716, %v748
    %v758 = vsub.f32 %v624, %v721
    %v759 = vsub.f32 %v625, %v725
    %v760 = vsub.f32 %v626, %v729
    %v761 = vsub.f32 %v627, %v733
    %v762 = vsub.f32 %v628, %v737
    %v763 = vsub.f32 %v629, %v741
    %v764 = vsub.f32 %v630, %v745
    %v765 = vsub.f32 %v631, %v749
    %v766 = vmul.f32 %v758, 1.442695
    %v767 = vpow.pop %v766
    %v768 = vmul.f32 %v759, 1.442695
    %v769 = vpow.pop %v768
    %v770 = vmul.f32 %v760, 1.442695
    %v771 = vpow.pop %v770
    %v772 = vmul.f32 %v761, 1.442695
    %v773 = vpow.pop %v772
    %v774 = vmul.f32 %v762, 1.442695
    %v775 = vpow.pop %v774
    %v776 = vmul.f32 %v763, 1.442695
    %v777 = vpow.pop %v776
    %v778 = vmul.f32 %v764, 1.442695
    %v779 = vpow.pop %v778
    %v780 = vmul.f32 %v765, 1.442695
    %v781 = vpow.pop %v780
    %790 = vset.pattern.permute.xlu0 0
    %791 = vperm.xlu0 %790, %v767
    %v792 = vpop.permute.xlu0 %791
    %793 = vset.pattern.permute.xlu0 0
    %794 = vperm.xlu0 %793, %v769
    %v795 = vpop.permute.xlu0 %794
    %796 = vset.pattern.permute.xlu0 0
    %797 = vperm.xlu0 %796, %v771
    %v798 = vpop.permute.xlu0 %797
    %799 = vset.pattern.permute.xlu0 0
    %800 = vperm.xlu0 %799, %v773
    %v801 = vpop.permute.xlu0 %800
    %802 = vset.pattern.permute.xlu0 0
    %803 = vperm.xlu0 %802, %v775
    %v804 = vpop.permute.xlu0 %803
    %805 = vset.pattern.permute.xlu0 0
    %806 = vperm.xlu0 %805, %v777
    %v807 = vpop.permute.xlu0 %806
    %808 = vset.pattern.permute.xlu0 0
    %809 = vperm.xlu0 %808, %v779
    %v810 = vpop.permute.xlu0 %809
    %811 = vset.pattern.permute.xlu0 0
    %812 = vperm.xlu0 %811, %v781
    %v813 = vpop.permute.xlu0 %812
    %v814 = vlaneseq
    %v815 = vshrl.u32 %v814, 7
    %v816 = vsub.s32 %v665, %v815
    %v817 = vrot.slane %v792, %v816
    %v818 = vlaneseq
    %v819 = vshrl.u32 %v818, 7
    %v820 = vsub.s32 %v665, %v819
    %v821 = vrot.slane %v795, %v820
    %v822 = vlaneseq
    %v823 = vshrl.u32 %v822, 7
    %v824 = vsub.s32 %v665, %v823
    %v825 = vrot.slane %v798, %v824
    %v826 = vlaneseq
    %v827 = vshrl.u32 %v826, 7
    %v828 = vsub.s32 %v665, %v827
    %v829 = vrot.slane %v801, %v828
    %v830 = vlaneseq
    %v831 = vshrl.u32 %v830, 7
    %v832 = vsub.s32 %v665, %v831
    %v833 = vrot.slane %v804, %v832
    %v834 = vlaneseq
    %v835 = vshrl.u32 %v834, 7
    %v836 = vsub.s32 %v665, %v835
    %v837 = vrot.slane %v807, %v836
    %v838 = vlaneseq
    %v839 = vshrl.u32 %v838, 7
    %v840 = vsub.s32 %v665, %v839
    %v841 = vrot.slane %v810, %v840
    %v842 = vlaneseq
    %v843 = vshrl.u32 %v842, 7
    %v844 = vsub.s32 %v665, %v843
    %v845 = vrot.slane %v813, %v844
    %v846 = vsel %vm698, %v821, %v817
    %v847 = vsel %vm700, %v825, %v846
    %v848 = vsel %vm702, %v829, %v847
    %v849 = vsel %vm704, %v833, %v848
    %v850 = vsel %vm706, %v837, %v849
    %v851 = vsel %vm708, %v841, %v850
    %v852 = vsel %vm710, %v845, %v851
    %v854 = vsel %vm713, %v852, 0.0
    %855 = vadd.xlane.f32.xlu0 %v854
    %v856 = vpop.xlane.xlu0 %855
    %v857 = vrcp.pop %v856
    %v859 = vlaneseq
    %v860 = vshrl.u32 %v859, 7
    %v861 = vsub.s32 0, %v860
    %v862 = vrot.slane %v857, %v861
    %v863 = vlaneseq
    %v864 = vshrl.u32 %v863, 7
    %v865 = vsub.s32 1, %v864
    %v866 = vrot.slane %v857, %v865
    %v867 = vlaneseq
    %v868 = vshrl.u32 %v867, 7
    %v869 = vsub.s32 2, %v868
    %v870 = vrot.slane %v857, %v869
    %v871 = vlaneseq
    %v872 = vshrl.u32 %v871, 7
    %v873 = vsub.s32 3, %v872
    %v874 = vrot.slane %v857, %v873
    %v875 = vlaneseq
    %v876 = vshrl.u32 %v875, 7
    %v877 = vsub.s32 4, %v876
    %v878 = vrot.slane %v857, %v877
    %v879 = vlaneseq
    %v880 = vshrl.u32 %v879, 7
    %v881 = vsub.s32 5, %v880
    %v882 = vrot.slane %v857, %v881
    %v883 = vlaneseq
    %v884 = vshrl.u32 %v883, 7
    %v885 = vsub.s32 6, %v884
    %v886 = vrot.slane %v857, %v885
    %v887 = vlaneseq
    %v888 = vshrl.u32 %v887, 7
    %v889 = vsub.s32 7, %v888
    %v890 = vrot.slane %v857, %v889
    %v899 = vmul.f32 %v767, %v862
    %v900 = vmul.f32 %v769, %v866
    %v901 = vmul.f32 %v771, %v870
    %v902 = vmul.f32 %v773, %v874
    %v903 = vmul.f32 %v775, %v878
    %v904 = vmul.f32 %v777, %v882
    %v905 = vmul.f32 %v779, %v886
    %v906 = vmul.f32 %v781, %v890
    %908 = vset.pattern.permute.xlu0 0
    %909 = vperm.xlu0 %908, %v899
    %v910 = vpop.permute.xlu0 %909
    %913 = vset.pattern.permute.xlu0 0
    %914 = vperm.xlu0 %913, %v900
    %v915 = vpop.permute.xlu0 %914
    %918 = vset.pattern.permute.xlu0 0
    %919 = vperm.xlu0 %918, %v901
    %v920 = vpop.permute.xlu0 %919
    %923 = vset.pattern.permute.xlu0 0
    %924 = vperm.xlu0 %923, %v902
    %v925 = vpop.permute.xlu0 %924
    %928 = vset.pattern.permute.xlu0 0
    %929 = vperm.xlu0 %928, %v903
    %v930 = vpop.permute.xlu0 %929
    %933 = vset.pattern.permute.xlu0 0
    %934 = vperm.xlu0 %933, %v904
    %v935 = vpop.permute.xlu0 %934
    %938 = vset.pattern.permute.xlu0 0
    %939 = vperm.xlu0 %938, %v905
    %v940 = vpop.permute.xlu0 %939
    %943 = vset.pattern.permute.xlu0 0
    %944 = vperm.xlu0 %943, %v906
    %v945 = vpop.permute.xlu0 %944
    %v947 = vmul.f32 %v910, %v151
    %v948 = vmul.f32 %v915, %v152
    %v949 = vmul.f32 %v920, %v153
    %v950 = vmul.f32 %v925, %v154
    %v951 = vmul.f32 %v930, %v155
    %v952 = vmul.f32 %v935, %v156
    %v953 = vmul.f32 %v940, %v157
    %v954 = vmul.f32 %v945, %v158
    %v955 = vrot.slane %v947, 4
    %v956 = vadd.f32 %v947, %v955
    %v957 = vrot.slane %v956, 2
    %v958 = vadd.f32 %v956, %v957
    %v959 = vrot.slane %v958, 1
    %v960 = vadd.f32 %v958, %v959
    %v961 = vrot.slane %v948, 4
    %v962 = vadd.f32 %v948, %v961
    %v963 = vrot.slane %v962, 2
    %v964 = vadd.f32 %v962, %v963
    %v965 = vrot.slane %v964, 1
    %v966 = vadd.f32 %v964, %v965
    %v967 = vrot.slane %v949, 4
    %v968 = vadd.f32 %v949, %v967
    %v969 = vrot.slane %v968, 2
    %v970 = vadd.f32 %v968, %v969
    %v971 = vrot.slane %v970, 1
    %v972 = vadd.f32 %v970, %v971
    %v973 = vrot.slane %v950, 4
    %v974 = vadd.f32 %v950, %v973
    %v975 = vrot.slane %v974, 2
    %v976 = vadd.f32 %v974, %v975
    %v977 = vrot.slane %v976, 1
    %v978 = vadd.f32 %v976, %v977
    %v979 = vrot.slane %v951, 4
    %v980 = vadd.f32 %v951, %v979
    %v981 = vrot.slane %v980, 2
    %v982 = vadd.f32 %v980, %v981
    %v983 = vrot.slane %v982, 1
    %v984 = vadd.f32 %v982, %v983
    %v985 = vrot.slane %v952, 4
    %v986 = vadd.f32 %v952, %v985
    %v987 = vrot.slane %v986, 2
    %v988 = vadd.f32 %v986, %v987
    %v989 = vrot.slane %v988, 1
    %v990 = vadd.f32 %v988, %v989
    %v991 = vrot.slane %v953, 4
    %v992 = vadd.f32 %v953, %v991
    %v993 = vrot.slane %v992, 2
    %v994 = vadd.f32 %v992, %v993
    %v995 = vrot.slane %v994, 1
    %v996 = vadd.f32 %v994, %v995
    %v997 = vrot.slane %v954, 4
    %v998 = vadd.f32 %v954, %v997
    %v999 = vrot.slane %v998, 2
    %v1000 = vadd.f32 %v998, %v999
    %v1001 = vrot.slane %v1000, 1
    %v1002 = vadd.f32 %v1000, %v1001
    %v1003 = vld [vmem:[#allocation2] sm:$0xff]
    %v1012 = vsel %vm698, %v966, %v960
    %v1013 = vsel %vm700, %v972, %v1012
    %v1014 = vsel %vm702, %v978, %v1013
    %v1015 = vsel %vm704, %v984, %v1014
    %v1016 = vsel %vm706, %v990, %v1015
    %v1017 = vsel %vm708, %v996, %v1016
    %v1018 = vsel %vm710, %v1002, %v1017
    %1020 = vmatprep.subr.mxu0 0.0
    %1021 = vmatpush1.msra.mxu0 %v232
    %1022 = vmatprep.subr.mxu0 0.0
    %1023 = vmatpush1.msra.mxu0 %v233
    %1024 = vmatprep.subr.mxu0 0.0
    %1025 = vmatpush1.msra.mxu0 %v234
    %1026 = vmatprep.subr.mxu0 0.0
    %1027 = vmatpush1.msra.mxu0 %v235
    %1028 = vmatprep.subr.mxu0 0.0
    %1029 = vmatpush1.msra.mxu0 %v236
    %1030 = vmatprep.subr.mxu0 0.0
    %1031 = vmatpush1.msra.mxu0 %v237
    %1032 = vmatprep.subr.mxu0 0.0
    %1033 = vmatpush1.msra.mxu0 %v238
    %1034 = vmatprep.subr.mxu0 0.0
    %1035 = vmatpush1.msra.mxu0 %v239
    %1036 = vmatprep.subr.mxu0 0.0
    %1037 = vmatpush1.msra.mxu0 %v240
    %1038 = vmatprep.subr.mxu0 0.0
    %1039 = vmatpush1.msra.mxu0 %v241
    %1040 = vmatprep.subr.mxu0 0.0
    %1041 = vmatpush1.msra.mxu0 %v242
    %1042 = vmatprep.subr.mxu0 0.0
    %1043 = vmatpush1.msra.mxu0 %v243
    %1044 = vmatprep.subr.mxu0 0.0
    %1045 = vmatpush1.msra.mxu0 %v244
    %1046 = vmatprep.subr.mxu0 0.0
    %1047 = vmatpush1.msra.mxu0 %v245
    %1048 = vmatprep.subr.mxu0 0.0
    %1049 = vmatpush1.msra.mxu0 %v246
    %1050 = vmatprep.subr.mxu0 0.0
    %1051 = vmatpush1.msra.mxu0 %v247
    %1052 = vmatprep.subr.mxu0 0.0
    %1053 = vmatpush1.msra.mxu0 0.0
    %1054 = vmatprep.subr.mxu0 0.0
    %1055 = vmatpush1.msra.mxu0 0.0
    %1056 = vmatprep.subr.mxu0 0.0
    %1057 = vmatpush1.msra.mxu0 0.0
    %1058 = vmatprep.subr.mxu0 0.0
    %1059 = vmatpush1.msra.mxu0 0.0
    %1060 = vmatprep.subr.mxu0 0.0
    %1061 = vmatpush1.msra.mxu0 0.0
    %1062 = vmatprep.subr.mxu0 0.0
    %1063 = vmatpush1.msra.mxu0 0.0
    %1064 = vmatprep.subr.mxu0 0.0
    %1065 = vmatpush1.msra.mxu0 0.0
    %1066 = vmatprep.subr.mxu0 0.0
    %1067 = vmatpush1.msra.mxu0 0.0
    %1068 = vmatprep.subr.mxu0 0.0
    %1069 = vmatpush1.msra.mxu0 0.0
    %1070 = vmatprep.subr.mxu0 0.0
    %1071 = vmatpush1.msra.mxu0 0.0
    %1072 = vmatprep.subr.mxu0 0.0
    %1073 = vmatpush1.msra.mxu0 0.0
    %1074 = vmatprep.subr.mxu0 0.0
    %1075 = vmatpush1.msra.mxu0 0.0
    %1076 = vmatprep.subr.mxu0 0.0
    %1077 = vmatpush1.msra.mxu0 0.0
    %1078 = vmatprep.subr.mxu0 0.0
    %1079 = vmatpush1.msra.mxu0 0.0
    %1080 = vmatprep.subr.mxu0 0.0
    %1081 = vmatpush1.msra.mxu0 0.0
    %1082 = vmatprep.subr.mxu0 0.0
    %1083 = vmatpush1.msra.mxu0 0.0
    %1084 = vmatprep.mubr.f32.mxu0 0.0
    %1085 = vmatmul.mubr.f32.gmra.mrb[0].mxu0 %v1018
    %v1086 = vpop.f32.mrb[0].mxu0
    %v1087 = vadd.f32 0.0, %v1086
    %v1088 = vpop.f32.mrb[0].mxu0
    %1089 = vdwg.mxu0
    %v1090 = vadd.f32 %v1003, %v1087
    %v1091 = vmax.f32 %v1090, 0.0
    %v1093 = vlaneseq
    %v1094 = vshrl.u32 %v1093, 7
    %v1095 = vsub.s32 0, %v1094
    %v1096 = vrot.slane %v296, %v1095
    %v1097 = vlaneseq
    %v1098 = vshrl.u32 %v1097, 7
    %v1099 = vsub.s32 1, %v1098
    %v1100 = vrot.slane %v296, %v1099
    %v1101 = vlaneseq
    %v1102 = vshrl.u32 %v1101, 7
    %v1103 = vsub.s32 2, %v1102
    %v1104 = vrot.slane %v296, %v1103
    %1108 = vmatprep.subr.mxu0 %v249
    %1109 = vmatpush1.msra.mxu0 %v248
    %1110 = vmatprep.subr.mxu0 %v252
    %1111 = vmatpush1.msra.mxu0 %v251
    %1112 = vmatprep.subr.mxu0 %v255
    %1113 = vmatpush1.msra.mxu0 %v254
    %1114 = vmatprep.subr.mxu0 %v258
    %1115 = vmatpush1.msra.mxu0 %v257
    %1116 = vmatprep.subr.mxu0 %v261
    %1117 = vmatpush1.msra.mxu0 %v260
    %1118 = vmatprep.subr.mxu0 %v264
    %1119 = vmatpush1.msra.mxu0 %v263
    %1120 = vmatprep.subr.mxu0 %v267
    %1121 = vmatpush1.msra.mxu0 %v266
    %1122 = vmatprep.subr.mxu0 %v270
    %1123 = vmatpush1.msra.mxu0 %v269
    %1124 = vmatprep.subr.mxu0 %v273
    %1125 = vmatpush1.msra.mxu0 %v272
    %1126 = vmatprep.subr.mxu0 %v276
    %1127 = vmatpush1.msra.mxu0 %v275
    %1128 = vmatprep.subr.mxu0 %v279
    %1129 = vmatpush1.msra.mxu0 %v278
    %1130 = vmatprep.subr.mxu0 %v282
    %1131 = vmatpush1.msra.mxu0 %v281
    %1132 = vmatprep.subr.mxu0 %v285
    %1133 = vmatpush1.msra.mxu0 %v284
    %1134 = vmatprep.subr.mxu0 %v288
    %1135 = vmatpush1.msra.mxu0 %v287
    %1136 = vmatprep.subr.mxu0 %v291
    %1137 = vmatpush1.msra.mxu0 %v290
    %1138 = vmatprep.subr.mxu0 %v294
    %1139 = vmatpush1.msra.mxu0 %v293
    %1140 = vmatprep.subr.mxu0 0.0
    %1141 = vmatpush1.msra.mxu0 0.0
    %1142 = vmatprep.subr.mxu0 0.0
    %1143 = vmatpush1.msra.mxu0 0.0
    %1144 = vmatprep.subr.mxu0 0.0
    %1145 = vmatpush1.msra.mxu0 0.0
    %1146 = vmatprep.subr.mxu0 0.0
    %1147 = vmatpush1.msra.mxu0 0.0
    %1148 = vmatprep.subr.mxu0 0.0
    %1149 = vmatpush1.msra.mxu0 0.0
    %1150 = vmatprep.subr.mxu0 0.0
    %1151 = vmatpush1.msra.mxu0 0.0
    %1152 = vmatprep.subr.mxu0 0.0
    %1153 = vmatpush1.msra.mxu0 0.0
    %1154 = vmatprep.subr.mxu0 0.0
    %1155 = vmatpush1.msra.mxu0 0.0
    %1156 = vmatprep.subr.mxu0 0.0
    %1157 = vmatpush1.msra.mxu0 0.0
    %1158 = vmatprep.subr.mxu0 0.0
    %1159 = vmatpush1.msra.mxu0 0.0
    %1160 = vmatprep.subr.mxu0 0.0
    %1161 = vmatpush1.msra.mxu0 0.0
    %1162 = vmatprep.subr.mxu0 0.0
    %1163 = vmatpush1.msra.mxu0 0.0
    %1164 = vmatprep.subr.mxu0 0.0
    %1165 = vmatpush1.msra.mxu0 0.0
    %1166 = vmatprep.subr.mxu0 0.0
    %1167 = vmatpush1.msra.mxu0 0.0
    %1168 = vmatprep.subr.mxu0 0.0
    %1169 = vmatpush1.msra.mxu0 0.0
    %1170 = vmatprep.subr.mxu0 0.0
    %1171 = vmatpush1.msra.mxu0 0.0
    %1172 = vmatprep.mubr.f32.mxu0 0.0
    %1173 = vmatmul.mubr.f32.gmra.mrb[0].mxu0 %v1091
    %v1174 = vpop.f32.mrb[0].mxu0
    %v1175 = vadd.f32 %v1096, %v1174
    %v1176 = vpop.f32.mrb[0].mxu0
    %v1177 = vadd.f32 %v1100, %v1176
    %1178 = vdwg.mxu0
    %1179 = vmatprep.subr.mxu0 0.0
    %1180 = vmatpush1.msra.mxu0 %v250
    %1181 = vmatprep.subr.mxu0 0.0
    %1182 = vmatpush1.msra.mxu0 %v253
    %1183 = vmatprep.subr.mxu0 0.0
    %1184 = vmatpush1.msra.mxu0 %v256
    %1185 = vmatprep.subr.mxu0 0.0
    %1186 = vmatpush1.msra.mxu0 %v259
    %1187 = vmatprep.subr.mxu0 0.0
    %1188 = vmatpush1.msra.mxu0 %v262
    %1189 = vmatprep.subr.mxu0 0.0
    %1190 = vmatpush1.msra.mxu0 %v265
    %1191 = vmatprep.subr.mxu0 0.0
    %1192 = vmatpush1.msra.mxu0 %v268
    %1193 = vmatprep.subr.mxu0 0.0
    %1194 = vmatpush1.msra.mxu0 %v271
    %1195 = vmatprep.subr.mxu0 0.0
    %1196 = vmatpush1.msra.mxu0 %v274
    %1197 = vmatprep.subr.mxu0 0.0
    %1198 = vmatpush1.msra.mxu0 %v277
    %1199 = vmatprep.subr.mxu0 0.0
    %1200 = vmatpush1.msra.mxu0 %v280
    %1201 = vmatprep.subr.mxu0 0.0
    %1202 = vmatpush1.msra.mxu0 %v283
    %1203 = vmatprep.subr.mxu0 0.0
    %1204 = vmatpush1.msra.mxu0 %v286
    %1205 = vmatprep.subr.mxu0 0.0
    %1206 = vmatpush1.msra.mxu0 %v289
    %1207 = vmatprep.subr.mxu0 0.0
    %1208 = vmatpush1.msra.mxu0 %v292
    %1209 = vmatprep.subr.mxu0 0.0
    %1210 = vmatpush1.msra.mxu0 %v295
    %1211 = vmatprep.subr.mxu0 0.0
    %1212 = vmatpush1.msra.mxu0 0.0
    %1213 = vmatprep.subr.mxu0 0.0
    %1214 = vmatpush1.msra.mxu0 0.0
    %1215 = vmatprep.subr.mxu0 0.0
    %1216 = vmatpush1.msra.mxu0 0.0
    %1217 = vmatprep.subr.mxu0 0.0
    %1218 = vmatpush1.msra.mxu0 0.0
    %1219 = vmatprep.subr.mxu0 0.0
    %1220 = vmatpush1.msra.mxu0 0.0
    %1221 = vmatprep.subr.mxu0 0.0
    %1222 = vmatpush1.msra.mxu0 0.0
    %1223 = vmatprep.subr.mxu0 0.0
    %1224 = vmatpush1.msra.mxu0 0.0
    %1225 = vmatprep.subr.mxu0 0.0
    %1226 = vmatpush1.msra.mxu0 0.0
    %1227 = vmatprep.subr.mxu0 0.0
    %1228 = vmatpush1.msra.mxu0 0.0
    %1229 = vmatprep.subr.mxu0 0.0
    %1230 = vmatpush1.msra.mxu0 0.0
    %1231 = vmatprep.subr.mxu0 0.0
    %1232 = vmatpush1.msra.mxu0 0.0
    %1233 = vmatprep.subr.mxu0 0.0
    %1234 = vmatpush1.msra.mxu0 0.0
    %1235 = vmatprep.subr.mxu0 0.0
    %1236 = vmatpush1.msra.mxu0 0.0
    %1237 = vmatprep.subr.mxu0 0.0
    %1238 = vmatpush1.msra.mxu0 0.0
    %1239 = vmatprep.subr.mxu0 0.0
    %1240 = vmatpush1.msra.mxu0 0.0
    %1241 = vmatprep.subr.mxu0 0.0
    %1242 = vmatpush1.msra.mxu0 0.0
    %1243 = vmatprep.mubr.f32.mxu0 0.0
    %1244 = vmatmul.mubr.f32.gmra.mrb[0].mxu0 %v1091
    %v1245 = vpop.f32.mrb[0].mxu0
    %v1246 = vadd.f32 %v1104, %v1245
    %v1247 = vpop.f32.mrb[0].mxu0
    %1248 = vdwg.mxu0
    %v1249 = vadd.f32 %v1175, %v476
    %v1250 = vmul.f32 %v1249, 0.5
    %v1251 = vtanh.pop %v1250
    %v1252 = vadd.f32 %v1251, 1.0
    %v1253 = vmul.f32 %v1252, 0.5
    %v1254 = vadd.f32 %v1177, %v477
    %v1255 = vmul.f32 %v1254, 0.5
    %v1256 = vtanh.pop %v1255
    %v1257 = vadd.f32 %v1256, 1.0
    %v1258 = vmul.f32 %v1257, 0.5
    %v1259 = vmul.f32 %v1253, %v478
    %v1260 = vadd.f32 %v1246, %v1259
    %v1261 = vtanh.pop %v1260
    %v1262 = vsub.f32 1.0, %v1258
    %v1263 = vmul.f32 %v1262, %v1261
    %v1264 = vmul.f32 %v1258, %v317
    %v1265 = vadd.f32 %v1263, %v1264
    %v1267 = vlaneseq
    %v1268 = vshrl.u32 %v1267, 7
    %v1269 = vsub.s32 0, %v1268
    %v1270 = vrot.slane %v315, %v1269
    %1272 = vmatprep.subr.mxu0 0.0
    %1273 = vmatpush1.msra.mxu0 %v299
    %1274 = vmatprep.subr.mxu0 0.0
    %1275 = vmatpush1.msra.mxu0 %v300
    %1276 = vmatprep.subr.mxu0 0.0
    %1277 = vmatpush1.msra.mxu0 %v301
    %1278 = vmatprep.subr.mxu0 0.0
    %1279 = vmatpush1.msra.mxu0 %v302
    %1280 = vmatprep.subr.mxu0 0.0
    %1281 = vmatpush1.msra.mxu0 %v303
    %1282 = vmatprep.subr.mxu0 0.0
    %1283 = vmatpush1.msra.mxu0 %v304
    %1284 = vmatprep.subr.mxu0 0.0
    %1285 = vmatpush1.msra.mxu0 %v305
    %1286 = vmatprep.subr.mxu0 0.0
    %1287 = vmatpush1.msra.mxu0 %v306
    %1288 = vmatprep.subr.mxu0 0.0
    %1289 = vmatpush1.msra.mxu0 %v307
    %1290 = vmatprep.subr.mxu0 0.0
    %1291 = vmatpush1.msra.mxu0 %v308
    %1292 = vmatprep.subr.mxu0 0.0
    %1293 = vmatpush1.msra.mxu0 %v309
    %1294 = vmatprep.subr.mxu0 0.0
    %1295 = vmatpush1.msra.mxu0 %v310
    %1296 = vmatprep.subr.mxu0 0.0
    %1297 = vmatpush1.msra.mxu0 %v311
    %1298 = vmatprep.subr.mxu0 0.0
    %1299 = vmatpush1.msra.mxu0 %v312
    %1300 = vmatprep.subr.mxu0 0.0
    %1301 = vmatpush1.msra.mxu0 %v313
    %1302 = vmatprep.subr.mxu0 0.0
    %1303 = vmatpush1.msra.mxu0 %v314
    %1304 = vmatprep.subr.mxu0 0.0
    %1305 = vmatpush1.msra.mxu0 0.0
    %1306 = vmatprep.subr.mxu0 0.0
    %1307 = vmatpush1.msra.mxu0 0.0
    %1308 = vmatprep.subr.mxu0 0.0
    %1309 = vmatpush1.msra.mxu0 0.0
    %1310 = vmatprep.subr.mxu0 0.0
    %1311 = vmatpush1.msra.mxu0 0.0
    %1312 = vmatprep.subr.mxu0 0.0
    %1313 = vmatpush1.msra.mxu0 0.0
    %1314 = vmatprep.subr.mxu0 0.0
    %1315 = vmatpush1.msra.mxu0 0.0
    %1316 = vmatprep.subr.mxu0 0.0
    %1317 = vmatpush1.msra.mxu0 0.0
    %1318 = vmatprep.subr.mxu0 0.0
    %1319 = vmatpush1.msra.mxu0 0.0
    %1320 = vmatprep.subr.mxu0 0.0
    %1321 = vmatpush1.msra.mxu0 0.0
    %1322 = vmatprep.subr.mxu0 0.0
    %1323 = vmatpush1.msra.mxu0 0.0
    %1324 = vmatprep.subr.mxu0 0.0
    %1325 = vmatpush1.msra.mxu0 0.0
    %1326 = vmatprep.subr.mxu0 0.0
    %1327 = vmatpush1.msra.mxu0 0.0
    %1328 = vmatprep.subr.mxu0 0.0
    %1329 = vmatpush1.msra.mxu0 0.0
    %1330 = vmatprep.subr.mxu0 0.0
    %1331 = vmatpush1.msra.mxu0 0.0
    %1332 = vmatprep.subr.mxu0 0.0
    %1333 = vmatpush1.msra.mxu0 0.0
    %1334 = vmatprep.subr.mxu0 0.0
    %1335 = vmatpush1.msra.mxu0 0.0
    %1336 = vmatprep.mubr.f32.mxu0 0.0
    %1337 = vmatmul.mubr.f32.gmra.mrb[0].mxu0 %v1265
    %v1338 = vpop.f32.mrb[0].mxu0
    %v1339 = vadd.f32 %v1270, %v1338
    %v1340 = vpop.f32.mrb[0].mxu0
    %1341 = vdwg.mxu0
    %1342 = vst [vmem:[#allocation16] sm:$0xff] %v1339
    %v1343 = vlaneseq
    %v1344 = vshrl.u32 %v1343, 7
    %v1345 = vsub.s32 %v665, %v1344
    %v1346 = vrot.slane %v910, %v1345
    %v1347 = vlaneseq
    %v1348 = vshrl.u32 %v1347, 7
    %v1349 = vsub.s32 %v665, %v1348
    %v1350 = vrot.slane %v915, %v1349
    %v1351 = vlaneseq
    %v1352 = vshrl.u32 %v1351, 7
    %v1353 = vsub.s32 %v665, %v1352
    %v1354 = vrot.slane %v920, %v1353
    %v1355 = vlaneseq
    %v1356 = vshrl.u32 %v1355, 7
    %v1357 = vsub.s32 %v665, %v1356
    %v1358 = vrot.slane %v925, %v1357
    %v1359 = vlaneseq
    %v1360 = vshrl.u32 %v1359, 7
    %v1361 = vsub.s32 %v665, %v1360
    %v1362 = vrot.slane %v930, %v1361
    %v1363 = vlaneseq
    %v1364 = vshrl.u32 %v1363, 7
    %v1365 = vsub.s32 %v665, %v1364
    %v1366 = vrot.slane %v935, %v1365
    %v1367 = vlaneseq
    %v1368 = vshrl.u32 %v1367, 7
    %v1369 = vsub.s32 %v665, %v1368
    %v1370 = vrot.slane %v940, %v1369
    %v1371 = vlaneseq
    %v1372 = vshrl.u32 %v1371, 7
    %v1373 = vsub.s32 %v665, %v1372
    %v1374 = vrot.slane %v945, %v1373
    %v1375 = vsel %vm698, %v1350, %v1346
    %v1376 = vsel %vm700, %v1354, %v1375
    %v1377 = vsel %vm702, %v1358, %v1376
    %v1378 = vsel %vm704, %v1362, %v1377
    %v1379 = vsel %vm706, %v1366, %v1378
    %v1380 = vsel %vm708, %v1370, %v1379
    %v1381 = vsel %vm710, %v1374, %v1380
    %1383 = vst.msk [vmem:[#allocation17] sm:$0xff] %vm713, %v1381
    %1384 = vst [vmem:[#allocation19] sm:$0xff] %v1265
    // Predicated region
    $region82: #{tpu_custom_call.1} parent=1 // pred_check
      _
    $region83: #{tpu_custom_call.1} parent=1 // pred_check_branch
      %1386 = sbr.rel (0) target = $region85
    $region84: #{tpu_custom_call.1} parent=1 // pred_region
      %s1388 = ssub.s32 128, 128
      %1389 = vsyncadd [#allocation4], %s1388
      %s1391 = sshll.u32 [#allocation16], 4
      %s1392 = int_to_ptr.vmem [resolvable:$true] %s1391
      %1394 = dma.vmem_to_hbm [thread:$0]  %s1392, 128, %s12, [#allocation4]
    $region85: #{tpu_custom_call.1} parent=1 // pred_fallthru
      _
    // Predicated region
    $region86: #{tpu_custom_call.1} parent=1 // pred_check
      _
    $region87: #{tpu_custom_call.1} parent=1 // pred_check_branch
      %1396 = sbr.rel (0) target = $region89
    $region88: #{tpu_custom_call.1} parent=1 // pred_region
      %s1398 = ssub.s32 128, 128
      %1399 = vsyncadd [#allocation18], %s1398
      %s1401 = sshll.u32 [#allocation17], 4
      %s1402 = int_to_ptr.vmem [resolvable:$true] %s1401
      %1404 = dma.vmem_to_hbm [thread:$0]  %s1402, 128, %s13, [#allocation18]
    $region89: #{tpu_custom_call.1} parent=1 // pred_fallthru
      _
    // Predicated region
    $region90: #{tpu_custom_call.1} parent=1 // pred_check
      _
    $region91: #{tpu_custom_call.1} parent=1 // pred_check_branch
      %1406 = sbr.rel (0) target = $region93
    $region92: #{tpu_custom_call.1} parent=1 // pred_region
      %s1408 = ssub.s32 128, 128
      %1409 = vsyncadd [#allocation18], %s1408
      %s1411 = sshll.u32 [#allocation19], 4
      %s1412 = int_to_ptr.vmem [resolvable:$true] %s1411
      %1414 = dma.vmem_to_hbm [thread:$0]  %s1412, 128, %s14, [#allocation18]
    $region93: #{tpu_custom_call.1} parent=1 // pred_fallthru
      _
    // Predicated region
    $region94: #{tpu_custom_call.1} parent=1 // pred_check
      _
    $region95: #{tpu_custom_call.1} parent=1 // pred_check_branch
      %1416 = sbr.rel (0) target = $region97
    $region96: #{tpu_custom_call.1} parent=1 // pred_region
      %1417 = dma.done [#allocation4], 128
    $region97: #{tpu_custom_call.1} parent=1 // pred_fallthru
      _
    // Predicated region
    $region98: #{tpu_custom_call.1} parent=1 // pred_check
      _
    $region99: #{tpu_custom_call.1} parent=1 // pred_check_branch
      %1419 = sbr.rel (0) target = $region101
    $region100: #{tpu_custom_call.1} parent=1 // pred_region
      %1420 = dma.done [#allocation18], 128
    $region101: #{tpu_custom_call.1} parent=1 // pred_fallthru
      _
    // Predicated region
    $region102: #{tpu_custom_call.1} parent=1 // pred_check
      _
    $region103: #{tpu_custom_call.1} parent=1 // pred_check_branch
      %1422 = sbr.rel (0) target = $region105
    $region104: #{tpu_custom_call.1} parent=1 // pred_region
      %1423 = dma.done [#allocation18], 128
    $region105: #{tpu_custom_call.1} parent=1 // pred_fallthru
      _
    %1424 = vsyncpa [#allocation3], 1
    %1425 = vsyncpa [#allocation6], 1
    %1426 = vsyncpa [#allocation9], 1
    %1427 = vsyncpa [#allocation12], 1
    %1428 = vsyncpa [#allocation15], 1
    %1429 = vsyncpa [#allocation4], 1
    %1430 = vsyncpa [#allocation18], 1

</llo_original>
